<compile_context>
chip_gen: v5e
topology: v5e:2x2
jax: 0.10.0
libtpu: 0.0.40
codegen_flags: <defaults>
</compile_context>

<pallas_src>
import functools

import numpy as np
import jax
import jax.numpy as jnp
from jax.experimental import pallas as pl
from jax.experimental.pallas import tpu as pltpu

EPSILON = 1e-10


def _round_up(x, m):
    return -(-x // m) * m


def _softplus(x):
    # torch.nn.Softplus (beta=1, threshold=20); clamp the exp argument so the
    # branch that is selected away never produces inf.
    return jnp.where(x > 20.0, x, jnp.log1p(jnp.exp(jnp.minimum(x, 20.0))))


def _gmm_attention_kernel(q_ref, wq_ref, bq_ref, wv_ref, db_ref, sb_ref,
                          mu_ref, mem_ref, mask_ref,
                          ctx_ref, att_ref, mu_out_ref,
                          log_coef_ref, inv_den_ref,
                          *, num_mixtures):
    K = num_mixtures
    c = pl.program_id(0)           # time-split (megacore) index
    t = pl.program_id(2)           # time-tile index within this split
    n_t = pl.num_programs(2)       # time tiles per split

    # ---- hoisted per-(split, batch-block) work: only on the first time tile ----
    @pl.when(t == 0)
    def _init():
        # query_layer: Linear(R -> A, bias) + tanh ; v: Linear(A -> 3K, no bias)
        pq = jnp.dot(q_ref[...], wq_ref[...],
                     preferred_element_type=jnp.float32) + bq_ref[...]       # (TB, A)
        inter = jnp.dot(jnp.tanh(pq), wv_ref[...],
                        preferred_element_type=jnp.float32)                  # (TB, 3K)

        w_hat = inter[:, 0:K]
        delta_hat = inter[:, K:2 * K] + db_ref[...]
        sigma_hat = inter[:, 2 * K:3 * K] + sb_ref[...]

        # --- gmm_version == 'v2'
        w_max = jnp.max(w_hat, axis=-1, keepdims=True)
        w_exp = jnp.exp(w_hat - w_max)
        w = w_exp / jnp.sum(w_exp, axis=-1, keepdims=True)                   # softmax
        delta = _softplus(delta_hat)
        sigma = _softplus(sigma_hat)
        z = float(np.sqrt(2.0 * np.pi)) * sigma          # == sqrt(2*pi*sigma^2)

        mu_out_ref[0] = mu_ref[...] + delta                                  # (TB, K)
        # fold w/(z+eps) into the exponent: exp(log_coef - diff^2 * inv_den)
        log_coef_ref[...] = jnp.log(w) - jnp.log(z + EPSILON)
        inv_den_ref[...] = 1.0 / (2.0 * sigma * sigma + EPSILON)
        ctx_ref[...] = jnp.zeros_like(ctx_ref)                               # accumulator

    # ---- per-time-tile work -----------------------------------------------------
    TB, TT = att_ref.shape
    base = ((c * n_t + t) * TT).astype(jnp.float32)                          # global offset
    jpos = base + jax.lax.broadcasted_iota(jnp.int32, (TB, TT), 1).astype(jnp.float32)

    mu_new = mu_out_ref[0]                                                   # (TB, K)
    log_coef = log_coef_ref[...]
    inv_den = inv_den_ref[...]

    energies = jnp.zeros((TB, TT), jnp.float32)
    for k in range(K):                        # static unroll over mixtures (K small)
        diff = jpos - mu_new[:, k:k + 1]
        energies = energies + jnp.exp(
            log_coef[:, k:k + 1] - diff * diff * inv_den[:, k:k + 1])

    # masked_fill_(~mask, 0) == multiply by {0.,1.} (mask is already float32)
    att = energies * mask_ref[...]
    att_ref[...] = att

    # context accumulation on the MXU: (TB,1,TT)bf16 @ (TB,TT,D)bf16 -> f32
    ctx_ref[0] += jnp.einsum(
        'bqt,btd->bqd', att.astype(mem_ref.dtype)[:, None, :], mem_ref[...],
        preferred_element_type=jnp.float32)[:, 0, :]


def gmm_attention_forward(query, memory, mask, mu, params, num_mixtures, *,
                          tile_t=512, time_core_splits=None):
    """GMMAttention.forward ('v2'); returns (context, attention_weights, mu_new)."""
    B, R = query.shape
    _, T, D = memory.shape
    A = params["wq"].shape[1]
    K = num_mixtures

    # --- batch tiling: always sublane-dense blocks of 8 (pad rows are masked off)
    tb = 8
    b_pad = _round_up(B, tb)
    n_b = b_pad // tb

    # --- megacore time split: with a single batch block, give the second v7x
    #     TensorCore half of the time tiles.  Harmless serial loop on v5e/v6e.
    if time_core_splits is None:
        time_core_splits = 2 if n_b == 1 else 1
    n_c = time_core_splits

    # --- lane axis: D padded to a multiple of 128 (MXU columns + unmasked ctx stores)
    d_pad = _round_up(D, 128)

    # --- time tiling: lane-dense tiles, shrunk when T is small (bounded padding)
    #     and capped so the double-buffered bf16 memory block stays <= ~24 MiB
    #     (safe inside v7x's 64 MiB physical VMEM; v5e/v6e have 128 MiB).
    tile = min(tile_t, _round_up(pl.cdiv(T, n_c), 128))
    max_tile_by_vmem = max(128, ((12 * 1024 * 1024) // (tb * d_pad * 2)) // 128 * 128)
    tile = max(128, min(tile, max_tile_by_vmem))

    n_t = pl.cdiv(T, n_c * tile)              # time tiles per core-split
    t_pad = n_c * n_t * tile

    # --- pad + cast (all zero padding; zeros are masked away / sliced off) -------
    mem = memory.astype(jnp.bfloat16)         # halve the HBM stream (mem-bound kernel)
    mem = jnp.pad(mem, ((0, b_pad - B), (0, t_pad - T), (0, d_pad - D)))
    mask_f = jnp.pad(mask.astype(jnp.float32), ((0, b_pad - B), (0, t_pad - T)))
    q = jnp.pad(query.astype(jnp.float32), ((0, b_pad - B), (0, 0)))
    mu_p = jnp.pad(mu.astype(jnp.float32), ((0, b_pad - B), (0, 0)))

    kernel = functools.partial(_gmm_attention_kernel, num_mixtures=K)

    grid_spec = pltpu.PrefetchScalarGridSpec(
        num_scalar_prefetch=0,
        grid=(n_c, n_b, n_t),
        in_specs=[
            pl.BlockSpec((tb, R), lambda c, b, t: (b, 0)),               # query
            pl.BlockSpec((R, A), lambda c, b, t: (0, 0)),                # wq
            pl.BlockSpec((1, A), lambda c, b, t: (0, 0)),                # bq
            pl.BlockSpec((A, 3 * K), lambda c, b, t: (0, 0)),            # wv
            pl.BlockSpec((1, K), lambda c, b, t: (0, 0)),                # delta_bias
            pl.BlockSpec((1, K), lambda c, b, t: (0, 0)),                # sigma_bias
            pl.BlockSpec((tb, K), lambda c, b, t: (b, 0)),               # mu (state)
            pl.BlockSpec((tb, tile, d_pad),
                         lambda c, b, t: (b, c * n_t + t, 0)),           # memory (bf16 stream)
            pl.BlockSpec((tb, tile), lambda c, b, t: (b, c * n_t + t)),  # mask f32 (stream)
        ],
        out_specs=(
            pl.BlockSpec((1, tb, d_pad), lambda c, b, t: (c, b, 0)),     # per-split ctx partial
            pl.BlockSpec((tb, tile), lambda c, b, t: (b, c * n_t + t)),  # attention
            pl.BlockSpec((1, tb, K), lambda c, b, t: (c, b, 0)),         # mu_new (per split)
        ),
        scratch_shapes=[
            pltpu.VMEM((tb, K), jnp.float32),   # log_coef = log(w) - log(z + eps)
            pltpu.VMEM((tb, K), jnp.float32),   # inv_den  = 1 / (2*sigma^2 + eps)
        ],
    )

    ctx_p, att, mu_out = pl.pallas_call(
        kernel,
        grid_spec=grid_spec,
        out_shape=(
            jax.ShapeDtypeStruct((n_c, b_pad, d_pad), jnp.float32),   # partial contexts
            jax.ShapeDtypeStruct((b_pad, t_pad), jnp.float32),        # attention weights
            jax.ShapeDtypeStruct((n_c, b_pad, K), jnp.float32),       # updated mu
        ),
        compiler_params=pltpu.CompilerParams(
            # split axis + batch axis shard across the two v7x TensorCores;
            # the time-reduction axis stays innermost ("arbitrary").
            dimension_semantics=("parallel", "parallel", "arbitrary"),
            vmem_limit_bytes=48 * 1024 * 1024,   # > 32 MiB scoped default, < v7x 64 MiB
        ),
    )(q, params["wq"], params["bq"], params["wv"],
      params["delta_bias"], params["sigma_bias"], mu_p, mem, mask_f)

    ctx = jnp.sum(ctx_p, axis=0)[:B, :D]     # combine per-split partial contexts
    return ctx, att[:B, :T], mu_out[0, :B]


def init_params(key, attention_rnn_dim, attention_dim, num_mixtures):
    """Deterministic synthetic init mirroring the torch module shapes (gmm 'v2')."""
    k1, k2, k3 = jax.random.split(key, 3)
    gain_tanh = 5.0 / 3.0  # calculate_gain('tanh')
    bound_q = gain_tanh * np.sqrt(6.0 / (attention_rnn_dim + attention_dim))
    wq = jax.random.uniform(k1, (attention_rnn_dim, attention_dim),
                            jnp.float32, -bound_q, bound_q)
    bound_b = 1.0 / np.sqrt(attention_rnn_dim)
    bq = jax.random.uniform(k3, (1, attention_dim), jnp.float32, -bound_b, bound_b)
    bound_v = 1.0 * np.sqrt(6.0 / (attention_dim + 3 * num_mixtures))  # gain('linear')
    wv = jax.random.uniform(k2, (attention_dim, 3 * num_mixtures),
                            jnp.float32, -bound_v, bound_v)
    delta_bias = jnp.full((1, num_mixtures), np.log(np.e - 1.0), jnp.float32)
    sigma_bias = jnp.full((1, num_mixtures), np.log(np.exp(10.0) - 1.0), jnp.float32)
    return {"wq": wq, "bq": bq, "wv": wv,
            "delta_bias": delta_bias, "sigma_bias": sigma_bias}


def _reference(query, memory, mask, mu, params, K):
    """Pure-JAX replica of GMMAttention.forward (v2) for correctness checking."""
    pq = query @ params["wq"] + params["bq"]
    inter = jnp.tanh(pq) @ params["wv"]
    w_hat, d_hat, s_hat = inter[:, :K], inter[:, K:2 * K], inter[:, 2 * K:]
    d_hat = d_hat + params["delta_bias"]
    s_hat = s_hat + params["sigma_bias"]
    w = jax.nn.softmax(w_hat, axis=-1)
    delta = jax.nn.softplus(d_hat)
    sig2 = jax.nn.softplus(s_hat) ** 2
    z = jnp.sqrt(2.0 * np.pi * sig2)
    mu_new = mu + delta
    T = memory.shape[1]
    j = jnp.arange(T, dtype=jnp.float32)[None, :, None]                  # (1, T, 1)
    mix = -(j - mu_new[:, None, :]) ** 2 / (2.0 * sig2[:, None, :] + EPSILON)
    mix = w[:, None, :] * jnp.exp(mix) / (z[:, None, :] + EPSILON)
    att = jnp.sum(mix, axis=-1) * mask.astype(jnp.float32)
    ctx = jnp.einsum("bt,btd->bd", att, memory)
    return ctx, att, mu_new


if __name__ == "__main__":
    B, R, A, K = 2, 32, 32, 5          # batch, attention_rnn_dim, attention_dim, mixtures
    T, D = 640, 32                     # encoder time steps, encoder dim

    key = jax.random.PRNGKey(0)
    kq, km, kp = jax.random.split(key, 3)
    query = jax.random.normal(kq, (B, R), jnp.float32)        # attention_hidden_state
    memory = jax.random.normal(km, (B, T, D), jnp.float32)    # inputs
    mask = jnp.arange(T)[None, :] < jnp.array([[T], [T - 37]])  # (B, T) bool
    mu0 = jnp.zeros((B, K), jnp.float32)                       # init_states: mu = 0

    params = init_params(kp, R, A, K)

    # small tile_t in the demo so the grid exercises multiple time tiles per split
    ctx, att, mu_new = gmm_attention_forward(query, memory, mask, mu0, params, K,
                                             tile_t=128)
    jax.block_until_ready((ctx, att, mu_new))

    ctx_r, att_r, mu_r = _reference(query, memory, mask, mu0, params, K)
    # context tolerance is loose because memory/att are streamed as bf16
    np.testing.assert_allclose(np.asarray(ctx), np.asarray(ctx_r), rtol=2e-2, atol=5e-3)
    np.testing.assert_allclose(np.asarray(att), np.asarray(att_r), rtol=5e-4, atol=1e-5)
    np.testing.assert_allclose(np.asarray(mu_new), np.asarray(mu_r), rtol=1e-4, atol=1e-5)

    print("KERNEL_OK")
</pallas_src>

<mosaic_0001>
module attributes {stable_mosaic.version = 11 : i64} {
  func.func @_gmm_attention_kernel(%arg0: i32, %arg1: i32, %arg2: i32, %arg3: memref<8x32xf32, #tpu.memory_space<vmem>>, %arg4: memref<32x32xf32, #tpu.memory_space<vmem>>, %arg5: memref<1x32xf32, #tpu.memory_space<vmem>>, %arg6: memref<32x15xf32, #tpu.memory_space<vmem>>, %arg7: memref<1x5xf32, #tpu.memory_space<vmem>>, %arg8: memref<1x5xf32, #tpu.memory_space<vmem>>, %arg9: memref<8x5xf32, #tpu.memory_space<vmem>>, %arg10: memref<8x128x128xbf16, #tpu.memory_space<vmem>>, %arg11: memref<8x128xf32, #tpu.memory_space<vmem>>, %arg12: memref<1x8x128xf32, #tpu.memory_space<vmem>>, %arg13: memref<8x128xf32, #tpu.memory_space<vmem>>, %arg14: memref<1x8x5xf32, #tpu.memory_space<vmem>>, %arg15: memref<8x5xf32, #tpu.memory_space<vmem>>, %arg16: memref<8x5xf32, #tpu.memory_space<vmem>>) attributes {dimension_semantics = [#tpu.dimension_semantics<parallel>, #tpu.dimension_semantics<parallel>, #tpu.dimension_semantics<arbitrary>], iteration_bounds = array<i64: 2, 1, 3>, scalar_prefetch = 0 : i64, scratch_operands = 2 : i64, tpu.core_type = #tpu.core_type<tc>, window_params = [{transform_indices = @transform_0, window_bounds = array<i64: 8, 32>}, {pipeline_mode = #tpu.pipeline_mode<synchronous>, transform_indices = @transform_1, window_bounds = array<i64: 32, 32>}, {pipeline_mode = #tpu.pipeline_mode<synchronous>, transform_indices = @transform_2, window_bounds = array<i64: 1, 32>}, {pipeline_mode = #tpu.pipeline_mode<synchronous>, transform_indices = @transform_3, window_bounds = array<i64: 32, 15>}, {pipeline_mode = #tpu.pipeline_mode<synchronous>, transform_indices = @transform_4, window_bounds = array<i64: 1, 5>}, {pipeline_mode = #tpu.pipeline_mode<synchronous>, transform_indices = @transform_5, window_bounds = array<i64: 1, 5>}, {transform_indices = @transform_6, window_bounds = array<i64: 8, 5>}, {transform_indices = @transform_7, window_bounds = array<i64: 8, 128, 128>}, {transform_indices = @transform_8, window_bounds = array<i64: 8, 128>}, {transform_indices = @transform_9, window_bounds = array<i64: 1, 8, 128>}, {transform_indices = @transform_10, window_bounds = array<i64: 8, 128>}, {transform_indices = @transform_11, window_bounds = array<i64: 1, 8, 5>}]} {
    %c0_i32 = arith.constant 0 : i32
    %0 = arith.cmpi eq, %arg2, %c0_i32 : i32
    %1 = arith.extui %0 : i1 to i32
    %c0_i32_0 = arith.constant 0 : i32
    %2 = arith.cmpi ne, %1, %c0_i32_0 : i32
    scf.if %2 {
      %c0_21 = arith.constant 0 : index
      %c0_22 = arith.constant 0 : index
      %90 = vector.load %arg3[%c0_21, %c0_22] : memref<8x32xf32, #tpu.memory_space<vmem>>, vector<8x32xf32>
      %c0_23 = arith.constant 0 : index
      %c0_24 = arith.constant 0 : index
      %91 = vector.load %arg4[%c0_23, %c0_24] : memref<32x32xf32, #tpu.memory_space<vmem>>, vector<32x32xf32>
      %cst_25 = arith.constant dense<0.000000e+00> : vector<8x32xf32>
      %92 = tpu.matmul %90, %91, %cst_25 {dimension_numbers = #tpu.dot_dimension_numbers<[1], [0], [0], [1], [0, 0, 1, 1], [], []>} : vector<8x32xf32>, vector<32x32xf32>, vector<8x32xf32> -> vector<8x32xf32>
      %c0_26 = arith.constant 0 : index
      %c0_27 = arith.constant 0 : index
      %93 = vector.load %arg5[%c0_26, %c0_27] : memref<1x32xf32, #tpu.memory_space<vmem>>, vector<1x32xf32>
      %94 = vector.broadcast %93 : vector<1x32xf32> to vector<8x32xf32>
      %95 = arith.addf %92, %94 : vector<8x32xf32>
      %96 = math.tanh %95 : vector<8x32xf32>
      %c0_28 = arith.constant 0 : index
      %c0_29 = arith.constant 0 : index
      %97 = vector.load %arg6[%c0_28, %c0_29] : memref<32x15xf32, #tpu.memory_space<vmem>>, vector<32x15xf32>
      %cst_30 = arith.constant dense<0.000000e+00> : vector<8x15xf32>
      %98 = tpu.matmul %96, %97, %cst_30 {dimension_numbers = #tpu.dot_dimension_numbers<[1], [0], [0], [1], [0, 0, 1, 1], [], []>} : vector<8x32xf32>, vector<32x15xf32>, vector<8x15xf32> -> vector<8x15xf32>
      %99 = vector.extract_strided_slice %98 {offsets = [0, 0], sizes = [8, 5], strides = [1, 1]} : vector<8x15xf32> to vector<8x5xf32>
      %100 = vector.extract_strided_slice %98 {offsets = [0, 5], sizes = [8, 5], strides = [1, 1]} : vector<8x15xf32> to vector<8x5xf32>
      %c0_31 = arith.constant 0 : index
      %c0_32 = arith.constant 0 : index
      %101 = vector.load %arg7[%c0_31, %c0_32] : memref<1x5xf32, #tpu.memory_space<vmem>>, vector<1x5xf32>
      %102 = vector.broadcast %101 : vector<1x5xf32> to vector<8x5xf32>
      %103 = arith.addf %100, %102 : vector<8x5xf32>
      %104 = vector.extract_strided_slice %98 {offsets = [0, 10], sizes = [8, 5], strides = [1, 1]} : vector<8x15xf32> to vector<8x5xf32>
      %c0_33 = arith.constant 0 : index
      %c0_34 = arith.constant 0 : index
      %105 = vector.load %arg8[%c0_33, %c0_34] : memref<1x5xf32, #tpu.memory_space<vmem>>, vector<1x5xf32>
      %106 = vector.broadcast %105 : vector<1x5xf32> to vector<8x5xf32>
      %107 = arith.addf %104, %106 : vector<8x5xf32>
      %cst_35 = arith.constant dense<0xFF800000> : vector<8xf32>
      %108 = vector.multi_reduction <maximumf>, %99, %cst_35 [1] : vector<8x5xf32> to vector<8xf32>
      %109 = vector.shape_cast %108 : vector<8xf32> to vector<8x1xf32>
      %110 = vector.broadcast %109 : vector<8x1xf32> to vector<8x5xf32>
      %111 = arith.subf %99, %110 : vector<8x5xf32>
      %112 = math.exp %111 : vector<8x5xf32>
      %cst_36 = arith.constant dense<0.000000e+00> : vector<8xf32>
      %113 = vector.multi_reduction <add>, %112, %cst_36 [1] : vector<8x5xf32> to vector<8xf32>
      %114 = vector.shape_cast %113 : vector<8xf32> to vector<8x1xf32>
      %115 = vector.broadcast %114 : vector<8x1xf32> to vector<8x5xf32>
      %116 = arith.divf %112, %115 : vector<8x5xf32>
      %cst_37 = arith.constant 2.000000e+01 : f32
      %117 = vector.broadcast %cst_37 : f32 to vector<8x5xf32>
      %118 = arith.cmpf ogt, %103, %117 : vector<8x5xf32>
      %cst_38 = arith.constant 2.000000e+01 : f32
      %119 = vector.broadcast %cst_38 : f32 to vector<8x5xf32>
      %120 = arith.minimumf %103, %119 : vector<8x5xf32>
      %121 = math.exp %120 : vector<8x5xf32>
      %122 = math.log1p %121 : vector<8x5xf32>
      %123 = arith.select %118, %103, %122 : vector<8x5xi1>, vector<8x5xf32>
      %cst_39 = arith.constant 2.000000e+01 : f32
      %124 = vector.broadcast %cst_39 : f32 to vector<8x5xf32>
      %125 = arith.cmpf ogt, %107, %124 : vector<8x5xf32>
      %cst_40 = arith.constant 2.000000e+01 : f32
      %126 = vector.broadcast %cst_40 : f32 to vector<8x5xf32>
      %127 = arith.minimumf %107, %126 : vector<8x5xf32>
      %128 = math.exp %127 : vector<8x5xf32>
      %129 = math.log1p %128 : vector<8x5xf32>
      %130 = arith.select %125, %107, %129 : vector<8x5xi1>, vector<8x5xf32>
      %cst_41 = arith.constant 2.50662827 : f32
      %131 = vector.broadcast %cst_41 : f32 to vector<8x5xf32>
      %132 = arith.mulf %131, %130 : vector<8x5xf32>
      %c0_42 = arith.constant 0 : index
      %c0_43 = arith.constant 0 : index
      %133 = vector.load %arg9[%c0_42, %c0_43] : memref<8x5xf32, #tpu.memory_space<vmem>>, vector<8x5xf32>
      %134 = arith.addf %133, %123 : vector<8x5xf32>
      %c0_44 = arith.constant 0 : index
      %c0_45 = arith.constant 0 : index
      %c0_46 = arith.constant 0 : index
      %135 = vector.load %arg14[%c0_44, %c0_45, %c0_46] : memref<1x8x5xf32, #tpu.memory_space<vmem>>, vector<1x8x5xf32>
      %136 = vector.shape_cast %135 : vector<1x8x5xf32> to vector<8x5xf32>
      %137 = vector.shape_cast %134 : vector<8x5xf32> to vector<1x8x5xf32>
      tpu.vector_store %arg14[%c0_44, %c0_45, %c0_46], %137 {strides = array<i32>} : memref<1x8x5xf32, #tpu.memory_space<vmem>>, vector<1x8x5xf32>,
      %138 = math.log %116 : vector<8x5xf32>
      %cst_47 = arith.constant 1.000000e-10 : f32
      %139 = vector.broadcast %cst_47 : f32 to vector<8x5xf32>
      %140 = arith.addf %132, %139 : vector<8x5xf32>
      %141 = math.log %140 : vector<8x5xf32>
      %142 = arith.subf %138, %141 : vector<8x5xf32>
      %c0_48 = arith.constant 0 : index
      %c0_49 = arith.constant 0 : index
      %143 = vector.load %arg15[%c0_48, %c0_49] : memref<8x5xf32, #tpu.memory_space<vmem>>, vector<8x5xf32>
      tpu.vector_store %arg15[%c0_48, %c0_49], %142 {strides = array<i32>} : memref<8x5xf32, #tpu.memory_space<vmem>>, vector<8x5xf32>,
      %cst_50 = arith.constant 2.000000e+00 : f32
      %144 = vector.broadcast %cst_50 : f32 to vector<8x5xf32>
      %145 = arith.mulf %144, %130 : vector<8x5xf32>
      %146 = arith.mulf %145, %130 : vector<8x5xf32>
      %cst_51 = arith.constant 1.000000e-10 : f32
      %147 = vector.broadcast %cst_51 : f32 to vector<8x5xf32>
      %148 = arith.addf %146, %147 : vector<8x5xf32>
      %cst_52 = arith.constant 1.000000e+00 : f32
      %149 = vector.broadcast %cst_52 : f32 to vector<8x5xf32>
      %150 = arith.divf %149, %148 : vector<8x5xf32>
      %c0_53 = arith.constant 0 : index
      %c0_54 = arith.constant 0 : index
      %151 = vector.load %arg16[%c0_53, %c0_54] : memref<8x5xf32, #tpu.memory_space<vmem>>, vector<8x5xf32>
      tpu.vector_store %arg16[%c0_53, %c0_54], %150 {strides = array<i32>} : memref<8x5xf32, #tpu.memory_space<vmem>>, vector<8x5xf32>,
      %cst_55 = arith.constant 0.000000e+00 : f32
      %152 = vector.broadcast %cst_55 : f32 to vector<1x8x128xf32>
      %c0_56 = arith.constant 0 : index
      %c0_57 = arith.constant 0 : index
      %c0_58 = arith.constant 0 : index
      %153 = vector.load %arg12[%c0_56, %c0_57, %c0_58] : memref<1x8x128xf32, #tpu.memory_space<vmem>>, vector<1x8x128xf32>
      tpu.vector_store %arg12[%c0_56, %c0_57, %c0_58], %152 {strides = array<i32>} : memref<1x8x128xf32, #tpu.memory_space<vmem>>, vector<1x8x128xf32>,
    } else {
    }
    %c3_i32 = arith.constant 3 : i32
    %3 = arith.muli %arg0, %c3_i32 : i32
    %4 = arith.addi %3, %arg2 : i32
    %c128_i32 = arith.constant 128 : i32
    %5 = arith.muli %4, %c128_i32 : i32
    %6 = arith.sitofp %5 : i32 to f32
    %7 = tpu.iota {dimensions = array<i32: 1>} : vector<8x128xi32>
    %8 = arith.sitofp %7 : vector<8x128xi32> to vector<8x128xf32>
    %9 = vector.broadcast %6 : f32 to vector<8x128xf32>
    %10 = arith.addf %9, %8 : vector<8x128xf32>
    %c0 = arith.constant 0 : index
    %c0_1 = arith.constant 0 : index
    %c0_2 = arith.constant 0 : index
    %11 = vector.load %arg14[%c0, %c0_1, %c0_2] : memref<1x8x5xf32, #tpu.memory_space<vmem>>, vector<1x8x5xf32>
    %12 = vector.shape_cast %11 : vector<1x8x5xf32> to vector<8x5xf32>
    %c0_3 = arith.constant 0 : index
    %c0_4 = arith.constant 0 : index
    %13 = vector.load %arg15[%c0_3, %c0_4] : memref<8x5xf32, #tpu.memory_space<vmem>>, vector<8x5xf32>
    %c0_5 = arith.constant 0 : index
    %c0_6 = arith.constant 0 : index
    %14 = vector.load %arg16[%c0_5, %c0_6] : memref<8x5xf32, #tpu.memory_space<vmem>>, vector<8x5xf32>
    %cst = arith.constant 0.000000e+00 : f32
    %15 = vector.broadcast %cst : f32 to vector<8x128xf32>
    %16 = vector.extract_strided_slice %12 {offsets = [0, 0], sizes = [8, 1], strides = [1, 1]} : vector<8x5xf32> to vector<8x1xf32>
    %17 = vector.broadcast %16 : vector<8x1xf32> to vector<8x128xf32>
    %18 = arith.subf %10, %17 : vector<8x128xf32>
    %19 = vector.extract_strided_slice %13 {offsets = [0, 0], sizes = [8, 1], strides = [1, 1]} : vector<8x5xf32> to vector<8x1xf32>
    %20 = arith.mulf %18, %18 : vector<8x128xf32>
    %21 = vector.extract_strided_slice %14 {offsets = [0, 0], sizes = [8, 1], strides = [1, 1]} : vector<8x5xf32> to vector<8x1xf32>
    %22 = vector.broadcast %21 : vector<8x1xf32> to vector<8x128xf32>
    %23 = arith.mulf %20, %22 : vector<8x128xf32>
    %24 = vector.broadcast %19 : vector<8x1xf32> to vector<8x128xf32>
    %25 = arith.subf %24, %23 : vector<8x128xf32>
    %26 = math.exp %25 : vector<8x128xf32>
    %27 = arith.addf %15, %26 : vector<8x128xf32>
    %28 = vector.extract_strided_slice %12 {offsets = [0, 1], sizes = [8, 1], strides = [1, 1]} : vector<8x5xf32> to vector<8x1xf32>
    %29 = vector.broadcast %28 : vector<8x1xf32> to vector<8x128xf32>
    %30 = arith.subf %10, %29 : vector<8x128xf32>
    %31 = vector.extract_strided_slice %13 {offsets = [0, 1], sizes = [8, 1], strides = [1, 1]} : vector<8x5xf32> to vector<8x1xf32>
    %32 = arith.mulf %30, %30 : vector<8x128xf32>
    %33 = vector.extract_strided_slice %14 {offsets = [0, 1], sizes = [8, 1], strides = [1, 1]} : vector<8x5xf32> to vector<8x1xf32>
    %34 = vector.broadcast %33 : vector<8x1xf32> to vector<8x128xf32>
    %35 = arith.mulf %32, %34 : vector<8x128xf32>
    %36 = vector.broadcast %31 : vector<8x1xf32> to vector<8x128xf32>
    %37 = arith.subf %36, %35 : vector<8x128xf32>
    %38 = math.exp %37 : vector<8x128xf32>
    %39 = arith.addf %27, %38 : vector<8x128xf32>
    %40 = vector.extract_strided_slice %12 {offsets = [0, 2], sizes = [8, 1], strides = [1, 1]} : vector<8x5xf32> to vector<8x1xf32>
    %41 = vector.broadcast %40 : vector<8x1xf32> to vector<8x128xf32>
    %42 = arith.subf %10, %41 : vector<8x128xf32>
    %43 = vector.extract_strided_slice %13 {offsets = [0, 2], sizes = [8, 1], strides = [1, 1]} : vector<8x5xf32> to vector<8x1xf32>
    %44 = arith.mulf %42, %42 : vector<8x128xf32>
    %45 = vector.extract_strided_slice %14 {offsets = [0, 2], sizes = [8, 1], strides = [1, 1]} : vector<8x5xf32> to vector<8x1xf32>
    %46 = vector.broadcast %45 : vector<8x1xf32> to vector<8x128xf32>
    %47 = arith.mulf %44, %46 : vector<8x128xf32>
    %48 = vector.broadcast %43 : vector<8x1xf32> to vector<8x128xf32>
    %49 = arith.subf %48, %47 : vector<8x128xf32>
    %50 = math.exp %49 : vector<8x128xf32>
    %51 = arith.addf %39, %50 : vector<8x128xf32>
    %52 = vector.extract_strided_slice %12 {offsets = [0, 3], sizes = [8, 1], strides = [1, 1]} : vector<8x5xf32> to vector<8x1xf32>
    %53 = vector.broadcast %52 : vector<8x1xf32> to vector<8x128xf32>
    %54 = arith.subf %10, %53 : vector<8x128xf32>
    %55 = vector.extract_strided_slice %13 {offsets = [0, 3], sizes = [8, 1], strides = [1, 1]} : vector<8x5xf32> to vector<8x1xf32>
    %56 = arith.mulf %54, %54 : vector<8x128xf32>
    %57 = vector.extract_strided_slice %14 {offsets = [0, 3], sizes = [8, 1], strides = [1, 1]} : vector<8x5xf32> to vector<8x1xf32>
    %58 = vector.broadcast %57 : vector<8x1xf32> to vector<8x128xf32>
    %59 = arith.mulf %56, %58 : vector<8x128xf32>
    %60 = vector.broadcast %55 : vector<8x1xf32> to vector<8x128xf32>
    %61 = arith.subf %60, %59 : vector<8x128xf32>
    %62 = math.exp %61 : vector<8x128xf32>
    %63 = arith.addf %51, %62 : vector<8x128xf32>
    %64 = vector.extract_strided_slice %12 {offsets = [0, 4], sizes = [8, 1], strides = [1, 1]} : vector<8x5xf32> to vector<8x1xf32>
    %65 = vector.broadcast %64 : vector<8x1xf32> to vector<8x128xf32>
    %66 = arith.subf %10, %65 : vector<8x128xf32>
    %67 = vector.extract_strided_slice %13 {offsets = [0, 4], sizes = [8, 1], strides = [1, 1]} : vector<8x5xf32> to vector<8x1xf32>
    %68 = arith.mulf %66, %66 : vector<8x128xf32>
    %69 = vector.extract_strided_slice %14 {offsets = [0, 4], sizes = [8, 1], strides = [1, 1]} : vector<8x5xf32> to vector<8x1xf32>
    %70 = vector.broadcast %69 : vector<8x1xf32> to vector<8x128xf32>
    %71 = arith.mulf %68, %70 : vector<8x128xf32>
    %72 = vector.broadcast %67 : vector<8x1xf32> to vector<8x128xf32>
    %73 = arith.subf %72, %71 : vector<8x128xf32>
    %74 = math.exp %73 : vector<8x128xf32>
    %75 = arith.addf %63, %74 : vector<8x128xf32>
    %c0_7 = arith.constant 0 : index
    %c0_8 = arith.constant 0 : index
    %76 = vector.load %arg11[%c0_7, %c0_8] : memref<8x128xf32, #tpu.memory_space<vmem>>, vector<8x128xf32>
    %77 = arith.mulf %75, %76 : vector<8x128xf32>
    %c0_9 = arith.constant 0 : index
    %c0_10 = arith.constant 0 : index
    %78 = vector.load %arg13[%c0_9, %c0_10] : memref<8x128xf32, #tpu.memory_space<vmem>>, vector<8x128xf32>
    tpu.vector_store %arg13[%c0_9, %c0_10], %77 {strides = array<i32>} : memref<8x128xf32, #tpu.memory_space<vmem>>, vector<8x128xf32>,
    %c0_11 = arith.constant 0 : index
    %c0_12 = arith.constant 0 : index
    %c0_13 = arith.constant 0 : index
    %79 = vector.load %arg12[%c0_11, %c0_12, %c0_13] : memref<1x8x128xf32, #tpu.memory_space<vmem>>, vector<1x8x128xf32>
    %80 = vector.shape_cast %79 : vector<1x8x128xf32> to vector<8x128xf32>
    %81 = arith.truncf %77 : vector<8x128xf32> to vector<8x128xbf16>
    %82 = vector.shape_cast %81 : vector<8x128xbf16> to vector<8x1x128xbf16>
    %c0_14 = arith.constant 0 : index
    %c0_15 = arith.constant 0 : index
    %c0_16 = arith.constant 0 : index
    %83 = vector.load %arg10[%c0_14, %c0_15, %c0_16] : memref<8x128x128xbf16, #tpu.memory_space<vmem>>, vector<8x128x128xbf16>
    "tpu.trace_start"() <{level = 10 : i32, message = "bqt,btd->bqd"}> : () -> ()
    %cst_17 = arith.constant dense<0.000000e+00> : vector<8x1x128xf32>
    %84 = tpu.matmul %82, %83, %cst_17 {dimension_numbers = #tpu.dot_dimension_numbers<[2], [1], [1], [2], [0, 0, 0, 1, 1, 2], [0], [0]>} : vector<8x1x128xbf16>, vector<8x128x128xbf16>, vector<8x1x128xf32> -> vector<8x1x128xf32>
    "tpu.trace_stop"() : () -> ()
    %85 = vector.shape_cast %84 : vector<8x1x128xf32> to vector<8x128xf32>
    %86 = arith.addf %80, %85 : vector<8x128xf32>
    %c0_18 = arith.constant 0 : index
    %c0_19 = arith.constant 0 : index
    %c0_20 = arith.constant 0 : index
    %87 = vector.load %arg12[%c0_18, %c0_19, %c0_20] : memref<1x8x128xf32, #tpu.memory_space<vmem>>, vector<1x8x128xf32>
    %88 = vector.shape_cast %87 : vector<1x8x128xf32> to vector<8x128xf32>
    %89 = vector.shape_cast %86 : vector<8x128xf32> to vector<1x8x128xf32>
    tpu.vector_store %arg12[%c0_18, %c0_19, %c0_20], %89 {strides = array<i32>} : memref<1x8x128xf32, #tpu.memory_space<vmem>>, vector<1x8x128xf32>,
    return
  }
  func.func @transform_0(%arg0: i32, %arg1: i32, %arg2: i32) -> (i32, i32) {
    %c0_i32 = arith.constant 0 : i32
    %c0_i32_0 = arith.constant 0 : i32
    return %arg1, %c0_i32 : i32, i32
  }
  func.func @transform_1(%arg0: i32, %arg1: i32, %arg2: i32) -> (i32, i32) {
    %c0_i32 = arith.constant 0 : i32
    %c0_i32_0 = arith.constant 0 : i32
    %c0_i32_1 = arith.constant 0 : i32
    return %c0_i32, %c0_i32_0 : i32, i32
  }
  func.func @transform_2(%arg0: i32, %arg1: i32, %arg2: i32) -> (i32, i32) {
    %c0_i32 = arith.constant 0 : i32
    %c0_i32_0 = arith.constant 0 : i32
    %c0_i32_1 = arith.constant 0 : i32
    return %c0_i32, %c0_i32_0 : i32, i32
  }
  func.func @transform_3(%arg0: i32, %arg1: i32, %arg2: i32) -> (i32, i32) {
    %c0_i32 = arith.constant 0 : i32
    %c0_i32_0 = arith.constant 0 : i32
    %c0_i32_1 = arith.constant 0 : i32
    return %c0_i32, %c0_i32_0 : i32, i32
  }
  func.func @transform_4(%arg0: i32, %arg1: i32, %arg2: i32) -> (i32, i32) {
    %c0_i32 = arith.constant 0 : i32
    %c0_i32_0 = arith.constant 0 : i32
    %c0_i32_1 = arith.constant 0 : i32
    return %c0_i32, %c0_i32_0 : i32, i32
  }
  func.func @transform_5(%arg0: i32, %arg1: i32, %arg2: i32) -> (i32, i32) {
    %c0_i32 = arith.constant 0 : i32
    %c0_i32_0 = arith.constant 0 : i32
    %c0_i32_1 = arith.constant 0 : i32
    return %c0_i32, %c0_i32_0 : i32, i32
  }
  func.func @transform_6(%arg0: i32, %arg1: i32, %arg2: i32) -> (i32, i32) {
    %c0_i32 = arith.constant 0 : i32
    %c0_i32_0 = arith.constant 0 : i32
    return %arg1, %c0_i32 : i32, i32
  }
  func.func @transform_7(%arg0: i32, %arg1: i32, %arg2: i32) -> (i32, i32, i32) {
    %c3_i32 = arith.constant 3 : i32
    %0 = arith.muli %arg0, %c3_i32 : i32
    %1 = arith.addi %0, %arg2 : i32
    %c0_i32 = arith.constant 0 : i32
    %c0_i32_0 = arith.constant 0 : i32
    return %arg1, %1, %c0_i32 : i32, i32, i32
  }
  func.func @transform_8(%arg0: i32, %arg1: i32, %arg2: i32) -> (i32, i32) {
    %c3_i32 = arith.constant 3 : i32
    %0 = arith.muli %arg0, %c3_i32 : i32
    %1 = arith.addi %0, %arg2 : i32
    %c0_i32 = arith.constant 0 : i32
    return %arg1, %1 : i32, i32
  }
  func.func @transform_9(%arg0: i32, %arg1: i32, %arg2: i32) -> (i32, i32, i32) {
    %c0_i32 = arith.constant 0 : i32
    %c0_i32_0 = arith.constant 0 : i32
    return %arg0, %arg1, %c0_i32 : i32, i32, i32
  }
  func.func @transform_10(%arg0: i32, %arg1: i32, %arg2: i32) -> (i32, i32) {
    %c3_i32 = arith.constant 3 : i32
    %0 = arith.muli %arg0, %c3_i32 : i32
    %1 = arith.addi %0, %arg2 : i32
    %c0_i32 = arith.constant 0 : i32
    return %arg1, %1 : i32, i32
  }
  func.func @transform_11(%arg0: i32, %arg1: i32, %arg2: i32) -> (i32, i32, i32) {
    %c0_i32 = arith.constant 0 : i32
    %c0_i32_0 = arith.constant 0 : i32
    return %arg0, %arg1, %c0_i32 : i32, i32, i32
  }
}

</mosaic_0001>

<llo_original>
// kernel: tpu_custom_call.1
$region0: #{tpu_custom_call.1}
  #allocation0 [shape = 'u32[]', space=smem, size = 0x4, offset = 0x4, fixed_abs, tag = 'smem constant byte address 0x4 - core index']
  #allocation1 [shape = 'u32[72,128]{1,0:T(1,128)}', space=vmem, size = 0x9000, scoped, tag = 'internal scratch']
  #allocation2 [shape = 'f32[8,5]{1,0:T(8,128)}', space=vmem, size = 0x1000, scoped, tag = 'scratch operand']
  #allocation3 [shape = 'f32[8,5]{1,0:T(8,128)}', space=vmem, size = 0x1000, scoped, tag = 'scratch operand']
  #allocation20 [shape = 's32[]', space=sflag, size = 0x4, offset = 0, fixed_abs, tag = 'sflag constant byte address 0x0 - dummy sync flag']
  %s0 = inlined_call_operand.hbm [shape: f32[8,32], index: 0, kind: input, shape index: {}]
  %s1 = inlined_call_operand.hbm [shape: f32[32,32], index: 1, kind: input, shape index: {}]
  %s2 = inlined_call_operand.hbm [shape: f32[1,32], index: 2, kind: input, shape index: {}]
  %s3 = inlined_call_operand.vmem [shape: f32[32,15], index: 3, kind: input, shape index: {}]
  %s4 = inlined_call_operand.hbm [shape: f32[1,5], index: 4, kind: input, shape index: {}]
  %s5 = inlined_call_operand.hbm [shape: f32[1,5], index: 5, kind: input, shape index: {}]
  %s6 = inlined_call_operand.hbm [shape: f32[8,5], index: 6, kind: input, shape index: {}]
  %s7 = inlined_call_operand.hbm [shape: bf16[8,768,128], index: 7, kind: input, shape index: {}]
  %s8 = inlined_call_operand.hbm [shape: f32[8,768], index: 8, kind: input, shape index: {}]
  %s9 = inlined_call_operand.hbm [shape: f32[2,8,128], index: 9, kind: output, shape index: {0}]
  %s10 = inlined_call_operand.hbm [shape: f32[8,768], index: 10, kind: output, shape index: {1}]
  %s11 = inlined_call_operand.vmem [shape: f32[2,8,5], index: 11, kind: output, shape index: {2}]
  %12 = xla_tuple %s9, %s10, %s11
  %s13 = sld [smem:[#allocation0]]
  $region121: #{tpu_custom_call.1} parent=0
    _
  %s15 = ssub.s32 1, %s13
  %s16 = scalar_select 0, %s15, %s13
  $region1: #{tpu_custom_call.1} parent=0
    #allocation4 [shape = 'u8[4096]{0}', space=vmem, size = 0x1000, scoped, tag = 'input window, operand 0, single buffered']
    #allocation5 [shape = 's32[2]{0}', space=sflag, size = 0x8, scoped, tag = 'scoped memory for tpu_custom_call.1']
    #allocation6 [shape = 's32[2]{0}', space=sflag, size = 0x8, scoped, tag = 'scoped memory for tpu_custom_call.1']
    #allocation7 [shape = 'u8[16384]{0}', space=vmem, size = 0x4000, scoped, tag = 'input window, operand 1, single buffered']
    #allocation8 [shape = 's32[1]{0}', space=sflag, size = 0x4, scoped, tag = 'scoped memory for tpu_custom_call.1']
    #allocation9 [shape = 'u8[512]{0}', space=vmem, size = 0x400, scoped, tag = 'input window, operand 2, single buffered']
    #allocation10 [shape = 'u8[512]{0}', space=vmem, size = 0x400, scoped, tag = 'input window, operand 4, single buffered']
    #allocation11 [shape = 's32[1]{0}', space=sflag, size = 0x4, scoped, tag = 'scoped memory for tpu_custom_call.1']
    #allocation12 [shape = 'u8[512]{0}', space=vmem, size = 0x400, scoped, tag = 'input window, operand 5, single buffered']
    #allocation13 [shape = 'u8[4096]{0}', space=vmem, size = 0x1000, scoped, tag = 'input window, operand 6, single buffered']
    #allocation14 [shape = 's32[1]{0}', space=sflag, size = 0x4, scoped, tag = 'scoped memory for tpu_custom_call.1']
    #allocation15 [shape = 'u8[524288]{0}', space=vmem, size = 0x80000, scoped, tag = 'input window, operand 7']
    #allocation16 [shape = 'u8[8192]{0}', space=vmem, size = 0x2000, scoped, tag = 'input window, operand 8']
    #allocation17 [shape = 'u8[8192]{0}', space=vmem, size = 0x2000, scoped, tag = 'output window, operand 0']
    #allocation18 [shape = 'u8[8192]{0}', space=vmem, size = 0x2000, scoped, tag = 'output window, operand 1']
    #allocation19 [shape = 's32[2]{0}', space=sflag, size = 0x8, scoped, tag = 'scoped memory for tpu_custom_call.1']
    %17 = vsyncpa [#allocation5], 0
    %18 = vsyncpa [#allocation8], 0
    %19 = vsyncpa [#allocation11], 0
    %20 = vsyncpa [#allocation14], 0
    %21 = vsyncpa [#allocation6], 0
    %s22 = scalar_lea.sflag [#allocation6], 1
    %23 = vsyncpa %s22, 0
    %24 = vsyncpa [#allocation19], 0
    %s25 = scalar_lea.sflag [#allocation19], 1
    %26 = vsyncpa %s25, 0
    loop: start=0, step=1, limit=8
    $region2: #{tpu_custom_call.1} parent=1 // loop_pre_header
      _
    $region3: #{tpu_custom_call.1} parent=1 // loop_header
      %s28 = sphi 0, %s32
      %p29 = scmp.ge.s32.totalorder %s28, 8
      %s35 = sphi 0, %s54
      %s36 = sphi 0, %s50
      %s37 = sphi 0, %s46
      %s38 = sphi 0, %s35
      %s39 = sphi 0, %s36
      %s40 = sphi 0, %s37
      %s41 = sphi 0, %s38
      %s42 = sphi 0, %s39
      %s43 = sphi 0, %s40
      %s57 = sphi 0, %s59
      %s60 = sphi 0, %s57
      %s61 = sphi 0, %s60
      %s77 = sphi 0, %s61
      %s81 = sphi 0, %s81
      %s83 = sphi 0, %s81
      %s84 = sphi 0, %s83
      %s98 = sphi 0, %s84
      %s102 = sphi 0, %s102
      %s104 = sphi 0, %s102
      %s105 = sphi 0, %s104
      %s119 = sphi 0, %s105
      %s123 = sphi 0, %s123
      %s125 = sphi 0, %s123
      %s126 = sphi 0, %s125
      %s140 = sphi 0, %s126
      %s144 = sphi 0, %s144
      %s146 = sphi 0, %s144
      %s147 = sphi 0, %s146
      %s161 = sphi 0, %s147
      %s165 = sphi 0, %s165
      %s167 = sphi 0, %s165
      %s168 = sphi 0, %s167
      %s182 = sphi 0, %s168
      %s188 = sphi 0, %s190
      %s191 = sphi 0, %s188
      %s192 = sphi 0, %s191
      %s208 = sphi 0, %s192
      %s220 = sphi 0, %s222
      %s223 = sphi 0, %s220
      %s224 = sphi 0, %s223
      %s240 = sphi 0, %s224
      %s252 = sphi 0, %s254
      %s255 = sphi 0, %s252
      %s256 = sphi 0, %s255
      %s272 = sphi 0, %s256
      %s280 = sphi 0, %s282
      %s283 = sphi 0, %s280
      %s284 = sphi 0, %s283
      %s300 = sphi 0, %s284
      %s312 = sphi 0, %s314
      %s315 = sphi 0, %s312
      %s316 = sphi 0, %s315
      %s332 = sphi 0, %s316
      %s340 = sphi 0, %s342
      %s343 = sphi 0, %s340
      %s344 = sphi 0, %s343
      %s360 = sphi 0, %s344
    $region4: #{tpu_custom_call.1} parent=1 // loop_header_branch
      %31 = sbr.rel (%p29) target = $region8
    $region5: #{tpu_custom_call.1} parent=1 // loop_body
      %s33 = ssub.s32 %s28, 1
      %s34 = ssub.s32 %s28, 2
      %s44 = sadd.s32 1, %s37
      %p45 = scmp.ge.s32.totalorder %s44, 3
      %s46 = scalar_select %p45, 0, %s44
      %s47 = sadd.s32 1, %s36
      %s48 = scalar_select %p45, %s47, %s36
      %p49 = scmp.ge.s32.totalorder %s48, 1
      %s50 = scalar_select %p49, 0, %s48
      %s51 = sadd.s32 1, %s35
      %s52 = scalar_select %p49, %s51, %s35
      %p53 = scmp.ge.s32.totalorder %s52, 2
      %s54 = scalar_select %p53, 0, %s52
      %s55 = ssub.s32 %s36, %s50
      %p56 = scmp.eq.s32.totalorder %s55, 0
      %s58 = sadd.s32 %s57, 1
      %s59 = scalar_select %p56, %s57, %s58
      %p62 = pneg %p56
      %p63 = scmp.eq.s32.totalorder %s28, 5
      %p64 = por %p62, %p63
      %p65 = scmp.ne.s32.totalorder %s57, %s60
      %p66 = scmp.eq.s32.totalorder %s28, 0
      %p67 = por %p65, %p66
      %p68 = scmp.ne.s32.totalorder %s57, %s60
      %p69 = scmp.eq.s32.totalorder %s33, 5
      %p70 = por %p68, %p69
      %p71 = scmp.ne.s32.totalorder %s60, %s61
      %p72 = scmp.eq.s32.totalorder %s33, 0
      %p73 = por %p71, %p72
      %p74 = scmp.ne.s32.totalorder %s60, %s61
      %p75 = scmp.eq.s32.totalorder %s34, 5
      %p76 = por %p74, %p75
      %p78 = scmp.ne.s32.totalorder %s61, %s77
      %p79 = scmp.eq.s32.totalorder %s34, 0
      %p80 = por %p78, %p79
      %s82 = sadd.s32 %s81, 1
      %p85 = scmp.eq.s32.totalorder %s28, 5
      %p86 = scmp.ne.s32.totalorder %s81, %s83
      %p87 = scmp.eq.s32.totalorder %s28, 0
      %p88 = por %p86, %p87
      %p89 = scmp.ne.s32.totalorder %s81, %s83
      %p90 = scmp.eq.s32.totalorder %s33, 5
      %p91 = por %p89, %p90
      %p92 = scmp.ne.s32.totalorder %s83, %s84
      %p93 = scmp.eq.s32.totalorder %s33, 0
      %p94 = por %p92, %p93
      %p95 = scmp.ne.s32.totalorder %s83, %s84
      %p96 = scmp.eq.s32.totalorder %s34, 5
      %p97 = por %p95, %p96
      %p99 = scmp.ne.s32.totalorder %s84, %s98
      %p100 = scmp.eq.s32.totalorder %s34, 0
      %p101 = por %p99, %p100
      %s103 = sadd.s32 %s102, 1
      %p106 = scmp.eq.s32.totalorder %s28, 5
      %p107 = scmp.ne.s32.totalorder %s102, %s104
      %p108 = scmp.eq.s32.totalorder %s28, 0
      %p109 = por %p107, %p108
      %p110 = scmp.ne.s32.totalorder %s102, %s104
      %p111 = scmp.eq.s32.totalorder %s33, 5
      %p112 = por %p110, %p111
      %p113 = scmp.ne.s32.totalorder %s104, %s105
      %p114 = scmp.eq.s32.totalorder %s33, 0
      %p115 = por %p113, %p114
      %p116 = scmp.ne.s32.totalorder %s104, %s105
      %p117 = scmp.eq.s32.totalorder %s34, 5
      %p118 = por %p116, %p117
      %p120 = scmp.ne.s32.totalorder %s105, %s119
      %p121 = scmp.eq.s32.totalorder %s34, 0
      %p122 = por %p120, %p121
      %s124 = sadd.s32 %s123, 1
      %p127 = scmp.eq.s32.totalorder %s28, 5
      %p128 = scmp.ne.s32.totalorder %s123, %s125
      %p129 = scmp.eq.s32.totalorder %s28, 0
      %p130 = por %p128, %p129
      %p131 = scmp.ne.s32.totalorder %s123, %s125
      %p132 = scmp.eq.s32.totalorder %s33, 5
      %p133 = por %p131, %p132
      %p134 = scmp.ne.s32.totalorder %s125, %s126
      %p135 = scmp.eq.s32.totalorder %s33, 0
      %p136 = por %p134, %p135
      %p137 = scmp.ne.s32.totalorder %s125, %s126
      %p138 = scmp.eq.s32.totalorder %s34, 5
      %p139 = por %p137, %p138
      %p141 = scmp.ne.s32.totalorder %s126, %s140
      %p142 = scmp.eq.s32.totalorder %s34, 0
      %p143 = por %p141, %p142
      %s145 = sadd.s32 %s144, 1
      %p148 = scmp.eq.s32.totalorder %s28, 5
      %p149 = scmp.ne.s32.totalorder %s144, %s146
      %p150 = scmp.eq.s32.totalorder %s28, 0
      %p151 = por %p149, %p150
      %p152 = scmp.ne.s32.totalorder %s144, %s146
      %p153 = scmp.eq.s32.totalorder %s33, 5
      %p154 = por %p152, %p153
      %p155 = scmp.ne.s32.totalorder %s146, %s147
      %p156 = scmp.eq.s32.totalorder %s33, 0
      %p157 = por %p155, %p156
      %p158 = scmp.ne.s32.totalorder %s146, %s147
      %p159 = scmp.eq.s32.totalorder %s34, 5
      %p160 = por %p158, %p159
      %p162 = scmp.ne.s32.totalorder %s147, %s161
      %p163 = scmp.eq.s32.totalorder %s34, 0
      %p164 = por %p162, %p163
      %s166 = sadd.s32 %s165, 1
      %p169 = scmp.eq.s32.totalorder %s28, 5
      %p170 = scmp.ne.s32.totalorder %s165, %s167
      %p171 = scmp.eq.s32.totalorder %s28, 0
      %p172 = por %p170, %p171
      %p173 = scmp.ne.s32.totalorder %s165, %s167
      %p174 = scmp.eq.s32.totalorder %s33, 5
      %p175 = por %p173, %p174
      %p176 = scmp.ne.s32.totalorder %s167, %s168
      %p177 = scmp.eq.s32.totalorder %s33, 0
      %p178 = por %p176, %p177
      %p179 = scmp.ne.s32.totalorder %s167, %s168
      %p180 = scmp.eq.s32.totalorder %s34, 5
      %p181 = por %p179, %p180
      %p183 = scmp.ne.s32.totalorder %s168, %s182
      %p184 = scmp.eq.s32.totalorder %s34, 0
      %p185 = por %p183, %p184
      %s186 = ssub.s32 %s36, %s50
      %p187 = scmp.eq.s32.totalorder %s186, 0
      %s189 = sadd.s32 %s188, 1
      %s190 = scalar_select %p187, %s188, %s189
      %p193 = pneg %p187
      %p194 = scmp.eq.s32.totalorder %s28, 5
      %p195 = por %p193, %p194
      %p196 = scmp.ne.s32.totalorder %s188, %s191
      %p197 = scmp.eq.s32.totalorder %s28, 0
      %p198 = por %p196, %p197
      %p199 = scmp.ne.s32.totalorder %s188, %s191
      %p200 = scmp.eq.s32.totalorder %s33, 5
      %p201 = por %p199, %p200
      %p202 = scmp.ne.s32.totalorder %s191, %s192
      %p203 = scmp.eq.s32.totalorder %s33, 0
      %p204 = por %p202, %p203
      %p205 = scmp.ne.s32.totalorder %s191, %s192
      %p206 = scmp.eq.s32.totalorder %s34, 5
      %p207 = por %p205, %p206
      %p209 = scmp.ne.s32.totalorder %s192, %s208
      %p210 = scmp.eq.s32.totalorder %s34, 0
      %p211 = por %p209, %p210
      %s212 = smul.u32 %s35, 3
      %s213 = sadd.s32 %s212, %s37
      %s214 = smul.u32 %s54, 3
      %s215 = sadd.s32 %s214, %s46
      %s216 = ssub.s32 %s36, %s50
      %s217 = ssub.s32 %s213, %s215
      %s218 = sor.u32 %s216, %s217
      %p219 = scmp.eq.s32.totalorder %s218, 0
      %s221 = sadd.s32 %s220, 1
      %s222 = scalar_select %p219, %s220, %s221
      %p225 = pneg %p219
      %p226 = scmp.eq.s32.totalorder %s28, 5
      %p227 = por %p225, %p226
      %p228 = scmp.ne.s32.totalorder %s220, %s223
      %p229 = scmp.eq.s32.totalorder %s28, 0
      %p230 = por %p228, %p229
      %p231 = scmp.ne.s32.totalorder %s220, %s223
      %p232 = scmp.eq.s32.totalorder %s33, 5
      %p233 = por %p231, %p232
      %p234 = scmp.ne.s32.totalorder %s223, %s224
      %p235 = scmp.eq.s32.totalorder %s33, 0
      %p236 = por %p234, %p235
      %p237 = scmp.ne.s32.totalorder %s223, %s224
      %p238 = scmp.eq.s32.totalorder %s34, 5
      %p239 = por %p237, %p238
      %p241 = scmp.ne.s32.totalorder %s224, %s240
      %p242 = scmp.eq.s32.totalorder %s34, 0
      %p243 = por %p241, %p242
      %s244 = smul.u32 %s35, 3
      %s245 = sadd.s32 %s244, %s37
      %s246 = smul.u32 %s54, 3
      %s247 = sadd.s32 %s246, %s46
      %s248 = ssub.s32 %s36, %s50
      %s249 = ssub.s32 %s245, %s247
      %s250 = sor.u32 %s248, %s249
      %p251 = scmp.eq.s32.totalorder %s250, 0
      %s253 = sadd.s32 %s252, 1
      %s254 = scalar_select %p251, %s252, %s253
      %p257 = pneg %p251
      %p258 = scmp.eq.s32.totalorder %s28, 5
      %p259 = por %p257, %p258
      %p260 = scmp.ne.s32.totalorder %s252, %s255
      %p261 = scmp.eq.s32.totalorder %s28, 0
      %p262 = por %p260, %p261
      %p263 = scmp.ne.s32.totalorder %s252, %s255
      %p264 = scmp.eq.s32.totalorder %s33, 5
      %p265 = por %p263, %p264
      %p266 = scmp.ne.s32.totalorder %s255, %s256
      %p267 = scmp.eq.s32.totalorder %s33, 0
      %p268 = por %p266, %p267
      %p269 = scmp.ne.s32.totalorder %s255, %s256
      %p270 = scmp.eq.s32.totalorder %s34, 5
      %p271 = por %p269, %p270
      %p273 = scmp.ne.s32.totalorder %s256, %s272
      %p274 = scmp.eq.s32.totalorder %s34, 0
      %p275 = por %p273, %p274
      %s276 = ssub.s32 %s35, %s54
      %s277 = ssub.s32 %s36, %s50
      %s278 = sor.u32 %s276, %s277
      %p279 = scmp.eq.s32.totalorder %s278, 0
      %s281 = sadd.s32 %s280, 1
      %s282 = scalar_select %p279, %s280, %s281
      %p285 = pneg %p279
      %p286 = scmp.eq.s32.totalorder %s28, 5
      %p287 = por %p285, %p286
      %p288 = scmp.ne.s32.totalorder %s280, %s283
      %p289 = scmp.eq.s32.totalorder %s28, 0
      %p290 = por %p288, %p289
      %p291 = scmp.ne.s32.totalorder %s280, %s283
      %p292 = scmp.eq.s32.totalorder %s33, 5
      %p293 = por %p291, %p292
      %p294 = scmp.ne.s32.totalorder %s283, %s284
      %p295 = scmp.eq.s32.totalorder %s33, 0
      %p296 = por %p294, %p295
      %p297 = scmp.ne.s32.totalorder %s283, %s284
      %p298 = scmp.eq.s32.totalorder %s34, 5
      %p299 = por %p297, %p298
      %p301 = scmp.ne.s32.totalorder %s284, %s300
      %p302 = scmp.eq.s32.totalorder %s34, 0
      %p303 = por %p301, %p302
      %s304 = smul.u32 %s35, 3
      %s305 = sadd.s32 %s304, %s37
      %s306 = smul.u32 %s54, 3
      %s307 = sadd.s32 %s306, %s46
      %s308 = ssub.s32 %s36, %s50
      %s309 = ssub.s32 %s305, %s307
      %s310 = sor.u32 %s308, %s309
      %p311 = scmp.eq.s32.totalorder %s310, 0
      %s313 = sadd.s32 %s312, 1
      %s314 = scalar_select %p311, %s312, %s313
      %p317 = pneg %p311
      %p318 = scmp.eq.s32.totalorder %s28, 5
      %p319 = por %p317, %p318
      %p320 = scmp.ne.s32.totalorder %s312, %s315
      %p321 = scmp.eq.s32.totalorder %s28, 0
      %p322 = por %p320, %p321
      %p323 = scmp.ne.s32.totalorder %s312, %s315
      %p324 = scmp.eq.s32.totalorder %s33, 5
      %p325 = por %p323, %p324
      %p326 = scmp.ne.s32.totalorder %s315, %s316
      %p327 = scmp.eq.s32.totalorder %s33, 0
      %p328 = por %p326, %p327
      %p329 = scmp.ne.s32.totalorder %s315, %s316
      %p330 = scmp.eq.s32.totalorder %s34, 5
      %p331 = por %p329, %p330
      %p333 = scmp.ne.s32.totalorder %s316, %s332
      %p334 = scmp.eq.s32.totalorder %s34, 0
      %p335 = por %p333, %p334
      %s336 = ssub.s32 %s35, %s54
      %s337 = ssub.s32 %s36, %s50
      %s338 = sor.u32 %s336, %s337
      %p339 = scmp.eq.s32.totalorder %s338, 0
      %s341 = sadd.s32 %s340, 1
      %s342 = scalar_select %p339, %s340, %s341
      %p345 = pneg %p339
      %p346 = scmp.eq.s32.totalorder %s28, 5
      %p347 = por %p345, %p346
      %p348 = scmp.ne.s32.totalorder %s340, %s343
      %p349 = scmp.eq.s32.totalorder %s28, 0
      %p350 = por %p348, %p349
      %p351 = scmp.ne.s32.totalorder %s340, %s343
      %p352 = scmp.eq.s32.totalorder %s33, 5
      %p353 = por %p351, %p352
      %p354 = scmp.ne.s32.totalorder %s343, %s344
      %p355 = scmp.eq.s32.totalorder %s33, 0
      %p356 = por %p354, %p355
      %p357 = scmp.ne.s32.totalorder %s343, %s344
      %p358 = scmp.eq.s32.totalorder %s34, 5
      %p359 = por %p357, %p358
      %p361 = scmp.ne.s32.totalorder %s344, %s360
      %p362 = scmp.eq.s32.totalorder %s34, 0
      %p363 = por %p361, %p362
      %p364 = scmp.le.s32.totalorder 1, %s28
      %p365 = scmp.lt.s32.totalorder %s28, 7
      %p366 = pnand %p364, %p365
      %p367 = pneg %p366
      // Predicated region
      $region9: #{tpu_custom_call.1} parent=5 // pred_check
        _
      $region10: #{tpu_custom_call.1} parent=5 // pred_check_branch
        %369 = sbr.rel (%p366) target = $region12
      $region11: #{tpu_custom_call.1} parent=5 // pred_region
        %s370 = ssub.s32 %s28, 1
        // Predicated region
        $region13: #{tpu_custom_call.1} parent=11 // pred_check
          %p371 = pneg %p73
        $region14: #{tpu_custom_call.1} parent=11 // pred_check_branch
          %373 = sbr.rel (%p371) target = $region16
        $region15: #{tpu_custom_call.1} parent=11 // pred_region
          %375 = vsyncadd [#allocation5], 0
          %s376 = smul.addr %s39, 8
          %s377 = scalar_lea.hbm %s0, %s376
          %s379 = sshll.u32 %s377, 4
          %s380 = int_to_ptr.hbm [resolvable:$true] %s379
          %s381 = sshll.u32 [#allocation4], 4
          %s382 = int_to_ptr.vmem [resolvable:$true] %s381
          %384 = dma.hbm_to_vmem [thread:$0]  %s380, 128, %s382, [#allocation5]
        $region16: #{tpu_custom_call.1} parent=11 // pred_fallthru
          _
        // Predicated region
        $region17: #{tpu_custom_call.1} parent=11 // pred_check
          %p385 = pneg %p94
        $region18: #{tpu_custom_call.1} parent=11 // pred_check_branch
          %387 = sbr.rel (%p385) target = $region20
        $region19: #{tpu_custom_call.1} parent=11 // pred_region
          %389 = vsyncadd [#allocation8], 0
          %s390 = sshll.u32 %s1, 4
          %s391 = int_to_ptr.hbm [resolvable:$true] %s390
          %s392 = sshll.u32 [#allocation7], 4
          %s393 = int_to_ptr.vmem [resolvable:$true] %s392
          %398 = dma.hbm_to_vmem [thread:$0]  %s391, 512, %s393, [#allocation8], 128, 128, 8
        $region20: #{tpu_custom_call.1} parent=11 // pred_fallthru
          _
        // Predicated region
        $region21: #{tpu_custom_call.1} parent=11 // pred_check
          %p399 = pneg %p115
        $region22: #{tpu_custom_call.1} parent=11 // pred_check_branch
          %401 = sbr.rel (%p399) target = $region24
        $region23: #{tpu_custom_call.1} parent=11 // pred_region
          %403 = vsyncadd [#allocation8], 0
          %s405 = sshll.u32 %s2, 4
          %s406 = int_to_ptr.hbm [resolvable:$true] %s405
          %s407 = sshll.u32 [#allocation9], 4
          %s408 = int_to_ptr.vmem [resolvable:$true] %s407
          %410 = dma.hbm_to_vmem [thread:$0]  %s406, 16, %s408, [#allocation8]
        $region24: #{tpu_custom_call.1} parent=11 // pred_fallthru
          _
        // Predicated region
        $region25: #{tpu_custom_call.1} parent=11 // pred_check
          %p411 = pneg %p136
        $region26: #{tpu_custom_call.1} parent=11 // pred_check_branch
          %413 = sbr.rel (%p411) target = $region28
        $region27: #{tpu_custom_call.1} parent=11 // pred_region
          _
        $region28: #{tpu_custom_call.1} parent=11 // pred_fallthru
          _
        // Predicated region
        $region29: #{tpu_custom_call.1} parent=11 // pred_check
          %p414 = pneg %p157
        $region30: #{tpu_custom_call.1} parent=11 // pred_check_branch
          %416 = sbr.rel (%p414) target = $region32
        $region31: #{tpu_custom_call.1} parent=11 // pred_region
          %418 = vsyncadd [#allocation11], 0
          %s420 = sshll.u32 %s4, 4
          %s421 = int_to_ptr.hbm [resolvable:$true] %s420
          %s422 = sshll.u32 [#allocation10], 4
          %s423 = int_to_ptr.vmem [resolvable:$true] %s422
          %425 = dma.hbm_to_vmem [thread:$0]  %s421, 16, %s423, [#allocation11]
        $region32: #{tpu_custom_call.1} parent=11 // pred_fallthru
          _
        // Predicated region
        $region33: #{tpu_custom_call.1} parent=11 // pred_check
          %p426 = pneg %p178
        $region34: #{tpu_custom_call.1} parent=11 // pred_check_branch
          %428 = sbr.rel (%p426) target = $region36
        $region35: #{tpu_custom_call.1} parent=11 // pred_region
          %430 = vsyncadd [#allocation11], 0
          %s432 = sshll.u32 %s5, 4
          %s433 = int_to_ptr.hbm [resolvable:$true] %s432
          %s434 = sshll.u32 [#allocation12], 4
          %s435 = int_to_ptr.vmem [resolvable:$true] %s434
          %437 = dma.hbm_to_vmem [thread:$0]  %s433, 16, %s435, [#allocation11]
        $region36: #{tpu_custom_call.1} parent=11 // pred_fallthru
          _
        // Predicated region
        $region37: #{tpu_custom_call.1} parent=11 // pred_check
          %p438 = pneg %p204
        $region38: #{tpu_custom_call.1} parent=11 // pred_check_branch
          %440 = sbr.rel (%p438) target = $region40
        $region39: #{tpu_custom_call.1} parent=11 // pred_region
          %442 = vsyncadd [#allocation14], 0
          %s443 = smul.addr %s39, 8
          %s444 = scalar_lea.hbm %s6, %s443
          %s446 = sshll.u32 %s444, 4
          %s447 = int_to_ptr.hbm [resolvable:$true] %s446
          %s448 = sshll.u32 [#allocation13], 4
          %s449 = int_to_ptr.vmem [resolvable:$true] %s448
          %451 = dma.hbm_to_vmem [thread:$0]  %s447, 128, %s449, [#allocation14]
        $region40: #{tpu_custom_call.1} parent=11 // pred_fallthru
          _
      $region12: #{tpu_custom_call.1} parent=5 // pred_fallthru
        _
      %p452 = scmp.lt.s32.totalorder %s28, 6
      // Predicated region
      $region41: #{tpu_custom_call.1} parent=5 // pred_check
        %p453 = pneg %p452
      $region42: #{tpu_custom_call.1} parent=5 // pred_check_branch
        %455 = sbr.rel (%p453) target = $region44
      $region43: #{tpu_custom_call.1} parent=5 // pred_region
        // Predicated region
        $region45: #{tpu_custom_call.1} parent=43 // pred_check
          %p456 = pneg %p230
        $region46: #{tpu_custom_call.1} parent=43 // pred_check_branch
          %458 = sbr.rel (%p456) target = $region48
        $region47: #{tpu_custom_call.1} parent=43 // pred_region
          #allocation21 [shape = 'u32[6]{0}', space=smem, size = 0x18, scoped, tag = 'DMA stride descriptor']
          %s459 = sand.u32 %s28, 1
          %s460 = scalar_lea.sflag [#allocation5], %s459
          %s461 = sand.u32 %s220, 1
          %s462 = smul.addr %s461, 512
          %s463 = scalar_lea.vmem [#allocation15], %s462
          %s464 = smul.u32 %s35, 3
          %s465 = sadd.s32 %s464, %s37
          %s466 = smul.u32 8, %s36
          %s467 = smul.u32 16, %s465
          %469 = vsyncadd %s460, 0
          %s470 = smul.addr %s466, 96
          %s471 = sadd.s32 %s467, %s470
          %s472 = smul.addr %s471, 4
          %s473 = scalar_lea.hbm %s7, %s472
          %s475 = sshll.u32 1, 14
          %s476 = sxor.u32 4294967295, %s475
          %s478 = sld [smem:[#allocation0]]
          %s479 = sadd.s32 2, %s478
          %s481 = sshll.u32 7, 26
          %s482 = sxor.u32 4294967295, %s481
          %s483 = sand.u32 0, %s482
          %s484 = sshll.u32 %s479, 26
          %s485 = sor.u32 %s483, %s484
          %s486 = sshll.u32 %s473, 4
          %s487 = int_to_ptr.hbm [resolvable:$true] %s486
          %s488 = sshll.u32 %s463, 4
          %s489 = int_to_ptr.vmem [resolvable:$true] %s488
          %495 = sst [smem:[#allocation21]] 6144
          %s496 = scalar_lea.smem [#allocation21], 1
          %497 = sst [smem:[%s496]] 1024
          %s498 = scalar_lea.smem [#allocation21], 2
          %499 = sst [smem:[%s498]] 16
          %s500 = scalar_lea.smem [#allocation21], 3
          %501 = sst [smem:[%s500]] 64
          %s502 = scalar_lea.smem [#allocation21], 4
          %503 = sst [smem:[%s502]] 64
          %s504 = scalar_lea.smem [#allocation21], 5
          %505 = sst [smem:[%s504]] 4
          %507 = dma.general %s487, 8192, %s489, %s460, [#allocation20], [#allocation21], %s485, 0
        $region48: #{tpu_custom_call.1} parent=43 // pred_fallthru
          _
        // Predicated region
        $region49: #{tpu_custom_call.1} parent=43 // pred_check
          %p508 = pneg %p262
        $region50: #{tpu_custom_call.1} parent=43 // pred_check_branch
          %510 = sbr.rel (%p508) target = $region52
        $region51: #{tpu_custom_call.1} parent=43 // pred_region
          %s511 = sand.u32 %s28, 1
          %s512 = scalar_lea.sflag [#allocation5], %s511
          %s513 = sand.u32 %s252, 1
          %s514 = smul.addr %s513, 8
          %s515 = scalar_lea.vmem [#allocation16], %s514
          %s516 = smul.u32 %s35, 3
          %s517 = sadd.s32 %s516, %s37
          %519 = vsyncadd %s512, 0
          %s520 = smul.addr %s36, 6
          %s521 = sadd.s32 %s517, %s520
          %s522 = smul.addr %s521, 8
          %s523 = scalar_lea.hbm %s8, %s522
          %s525 = sshll.u32 %s523, 4
          %s526 = int_to_ptr.hbm [resolvable:$true] %s525
          %s527 = sshll.u32 %s515, 4
          %s528 = int_to_ptr.vmem [resolvable:$true] %s527
          %530 = dma.hbm_to_vmem [thread:$0]  %s526, 128, %s528, %s512
        $region52: #{tpu_custom_call.1} parent=43 // pred_fallthru
          _
      $region44: #{tpu_custom_call.1} parent=5 // pred_fallthru
        _
      %p531 = scmp.le.s32.totalorder 1, %s28
      %p532 = scmp.lt.s32.totalorder %s28, 7
      %p533 = pnand %p531, %p532
      %p534 = pneg %p533
      // Predicated region
      $region53: #{tpu_custom_call.1} parent=5 // pred_check
        _
      $region54: #{tpu_custom_call.1} parent=5 // pred_check_branch
        %536 = sbr.rel (%p533) target = $region56
      $region55: #{tpu_custom_call.1} parent=5 // pred_region
        %s537 = ssub.s32 %s28, 1
        // Predicated region
        $region57: #{tpu_custom_call.1} parent=55 // pred_check
          %p538 = pneg %p73
        $region58: #{tpu_custom_call.1} parent=55 // pred_check_branch
          %540 = sbr.rel (%p538) target = $region60
        $region59: #{tpu_custom_call.1} parent=55 // pred_region
          %542 = dma.done [#allocation5], 128
        $region60: #{tpu_custom_call.1} parent=55 // pred_fallthru
          _
        // Predicated region
        $region61: #{tpu_custom_call.1} parent=55 // pred_check
          %p543 = pneg %p94
        $region62: #{tpu_custom_call.1} parent=55 // pred_check_branch
          %545 = sbr.rel (%p543) target = $region64
        $region63: #{tpu_custom_call.1} parent=55 // pred_region
          %547 = dma.done [#allocation8], 512
        $region64: #{tpu_custom_call.1} parent=55 // pred_fallthru
          _
        // Predicated region
        $region65: #{tpu_custom_call.1} parent=55 // pred_check
          %p548 = pneg %p115
        $region66: #{tpu_custom_call.1} parent=55 // pred_check_branch
          %550 = sbr.rel (%p548) target = $region68
        $region67: #{tpu_custom_call.1} parent=55 // pred_region
          %552 = dma.done [#allocation8], 16
        $region68: #{tpu_custom_call.1} parent=55 // pred_fallthru
          _
        // Predicated region
        $region69: #{tpu_custom_call.1} parent=55 // pred_check
          %p553 = pneg %p157
        $region70: #{tpu_custom_call.1} parent=55 // pred_check_branch
          %555 = sbr.rel (%p553) target = $region72
        $region71: #{tpu_custom_call.1} parent=55 // pred_region
          %557 = dma.done [#allocation11], 16
        $region72: #{tpu_custom_call.1} parent=55 // pred_fallthru
          _
        // Predicated region
        $region73: #{tpu_custom_call.1} parent=55 // pred_check
          %p558 = pneg %p178
        $region74: #{tpu_custom_call.1} parent=55 // pred_check_branch
          %560 = sbr.rel (%p558) target = $region76
        $region75: #{tpu_custom_call.1} parent=55 // pred_region
          %562 = dma.done [#allocation11], 16
        $region76: #{tpu_custom_call.1} parent=55 // pred_fallthru
          _
        // Predicated region
        $region77: #{tpu_custom_call.1} parent=55 // pred_check
          %p563 = pneg %p204
        $region78: #{tpu_custom_call.1} parent=55 // pred_check_branch
          %565 = sbr.rel (%p563) target = $region80
        $region79: #{tpu_custom_call.1} parent=55 // pred_region
          %567 = dma.done [#allocation14], 128
        $region80: #{tpu_custom_call.1} parent=55 // pred_fallthru
          _
        %s568 = sand.u32 %s33, 1
        %s569 = scalar_lea.sflag [#allocation5], %s568
        %s570 = sand.u32 %s223, 1
        %s571 = smul.addr %s570, 512
        %s572 = scalar_lea.vmem [#allocation15], %s571
        // Predicated region
        $region81: #{tpu_custom_call.1} parent=55 // pred_check
          %p573 = pneg %p236
        $region82: #{tpu_custom_call.1} parent=55 // pred_check_branch
          %575 = sbr.rel (%p573) target = $region84
        $region83: #{tpu_custom_call.1} parent=55 // pred_region
          %577 = dma.done %s569, 8192
        $region84: #{tpu_custom_call.1} parent=55 // pred_fallthru
          _
        %s578 = sand.u32 %s33, 1
        %s579 = scalar_lea.sflag [#allocation5], %s578
        %s580 = sand.u32 %s255, 1
        %s581 = smul.addr %s580, 8
        %s582 = scalar_lea.vmem [#allocation16], %s581
        // Predicated region
        $region85: #{tpu_custom_call.1} parent=55 // pred_check
          %p583 = pneg %p268
        $region86: #{tpu_custom_call.1} parent=55 // pred_check_branch
          %585 = sbr.rel (%p583) target = $region88
        $region87: #{tpu_custom_call.1} parent=55 // pred_region
          %587 = dma.done %s579, 128
        $region88: #{tpu_custom_call.1} parent=55 // pred_fallthru
          _
        %p588 = pneg %p73
        %p589 = pneg %p70
        %p590 = pneg %p94
        %p591 = pneg %p91
        %p592 = pneg %p115
        %p593 = pneg %p112
        %p594 = pneg %p136
        %p595 = pneg %p133
        %p596 = pneg %p157
        %p597 = pneg %p154
        %p598 = pneg %p178
        %p599 = pneg %p175
        %p600 = pneg %p204
        %p601 = pneg %p201
        %s602 = sand.u32 %s33, 1
        %s603 = scalar_lea.sflag [#allocation5], %s602
        %s604 = sand.u32 %s223, 1
        %s605 = smul.addr %s604, 512
        %s606 = scalar_lea.vmem [#allocation15], %s605
        %p607 = pneg %p236
        %p608 = pneg %p233
        %s609 = sand.u32 %s33, 1
        %s610 = scalar_lea.sflag [#allocation5], %s609
        %s611 = sand.u32 %s255, 1
        %s612 = smul.addr %s611, 8
        %s613 = scalar_lea.vmem [#allocation16], %s612
        %p614 = pneg %p268
        %p615 = pneg %p265
        %p616 = pneg %p296
        %p617 = pneg %p293
        %s618 = sand.u32 %s283, 1
        %s619 = scalar_lea.sflag [#allocation6], %s618
        %s620 = sand.u32 %s283, 1
        %s621 = smul.addr %s620, 8
        %s622 = scalar_lea.vmem [#allocation17], %s621
        %p623 = pneg %p328
        %p624 = pneg %p325
        %s625 = sand.u32 %s315, 1
        %s626 = scalar_lea.sflag [#allocation19], %s625
        %s627 = sand.u32 %s315, 1
        %s628 = smul.addr %s627, 8
        %s629 = scalar_lea.vmem [#allocation18], %s628
        %p630 = pneg %p356
        %p631 = pneg %p353
        %p632 = scmp.lt.s32.totalorder %s38, 1
        %s633 = scalar_select %p632, %s38, 1
        %p634 = scmp.lt.s32.totalorder %s39, 0
        %s635 = scalar_select %p634, %s39, 0
        %s636 = sadd.s32 %s635, %s633
        %s637 = smul.addr %s636, 8
        %s638 = scalar_lea.vmem %s11, %s637
        %s639 = smul.u32 %s38, 3
        %s640 = sadd.s32 %s639, %s40
        %s641 = smul.u32 8, %s39
        %s642 = smul.u32 16, %s640
        %s643 = smul.u32 %s38, 3
        %s644 = sadd.s32 %s643, %s40
        %s645 = smul.u32 %s38, 3
        %s646 = sadd.s32 %s645, %s40
        %p647 = scmp.lt.s32.totalorder %s38, 1
        %s648 = scalar_select %p647, %s38, 1
        %p649 = scmp.lt.s32.totalorder %s39, 0
        %s650 = scalar_select %p649, %s39, 0
        %s651 = sadd.s32 %s650, %s648
        %s652 = smul.addr %s651, 8
        %s653 = scalar_lea.vmem %s11, %s652
        %p654 = scmp.eq.s32.totalorder %s40, 0
        // Predicated region
        $region89: #{tpu_custom_call.1} parent=55 // pred_check
          %p655 = pneg %p654
        $region90: #{tpu_custom_call.1} parent=55 // pred_check_branch
          %657 = sbr.rel (%p655) target = $region92
        $region91: #{tpu_custom_call.1} parent=55 // pred_region
          %v658 = vld [vmem:[#allocation4] sm:$0xff]
          %v659 = vld [vmem:[#allocation7] sm:$0xff]
          %v660 = vld [vmem:[#allocation7 + $0x8] sm:$0xff]
          %v661 = vld [vmem:[#allocation7 + $0x10] sm:$0xff]
          %v662 = vld [vmem:[#allocation7 + $0x18] sm:$0xff]
          %v663 = vld [vmem:[#allocation9] sm:$0x1]
          %v665 = vperm.slane %v663, 0
          %vm667 = vcmask 261120
          %v669 = vsel %vm667, %v658, 0
          %671 = vmatpush.msra.mxu0 0.0
          %672 = vmatpush.msra.mxu0 0.0
          %673 = vmatpush.msra.mxu0 0.0
          %674 = vmatpush.msra.mxu0 0.0
          %675 = vmatpush.msra.mxu0 0.0
          %676 = vmatpush.msra.mxu0 0.0
          %677 = vmatpush.msra.mxu0 0.0
          %678 = vmatpush.msra.mxu0 0.0
          %679 = vmatpush.msra.mxu0 0.0
          %680 = vmatpush.msra.mxu0 0.0
          %681 = vmatpush.msra.mxu0 0.0
          %682 = vmatpush.msra.mxu0 0.0
          %683 = vmatpush.msra.mxu0 %v662
          %684 = vmatpush.msra.mxu0 %v661
          %685 = vmatpush.msra.mxu0 %v660
          %686 = vmatpush.msra.mxu0 %v659
          %687 = vmatmul.f32.gmra.mxu0 %v669
          %v688 = vpop.f32.mrf.mxu0
          %v689 = vadd.f32 %v665, %v688
          %690 = vdwg.mxu0
          %v691 = vtanh.pop %v689
          %v692 = vld [vmem:[%s3] sm:$0xff]
          %v693 = vld [vmem:[%s3 + $0x8] sm:$0xff]
          %v694 = vld [vmem:[%s3 + $0x10] sm:$0xff]
          %v695 = vld [vmem:[%s3 + $0x18] sm:$0xff]
          %v697 = vsel %vm667, %v691, 0
          %699 = vmatpush.msra.mxu0 0.0
          %700 = vmatpush.msra.mxu0 0.0
          %701 = vmatpush.msra.mxu0 0.0
          %702 = vmatpush.msra.mxu0 0.0
          %703 = vmatpush.msra.mxu0 0.0
          %704 = vmatpush.msra.mxu0 0.0
          %705 = vmatpush.msra.mxu0 0.0
          %706 = vmatpush.msra.mxu0 0.0
          %707 = vmatpush.msra.mxu0 0.0
          %708 = vmatpush.msra.mxu0 0.0
          %709 = vmatpush.msra.mxu0 0.0
          %710 = vmatpush.msra.mxu0 0.0
          %711 = vmatpush.msra.mxu0 %v695
          %712 = vmatpush.msra.mxu0 %v694
          %713 = vmatpush.msra.mxu0 %v693
          %714 = vmatpush.msra.mxu0 %v692
          %715 = vmatmul.f32.gmra.mxu0 %v697
          %v716 = vpop.f32.mrf.mxu0
          %v717 = vadd.f32 0.0, %v716
          %718 = vdwg.mxu0
          %v719 = vld [vmem:[#allocation10] sm:$0x1]
          %v721 = vperm.slane %v719, 0
          %722 = vrot.lane.b32.xlu0 %v721, 5
          %v723 = vpop.permute.xlu0 %722
          %v725 = vadd.f32 %v717, %v723
          %v726 = vld [vmem:[#allocation12] sm:$0x1]
          %v728 = vperm.slane %v726, 0
          %729 = vrot.lane.b32.xlu0 %v728, 10
          %v730 = vpop.permute.xlu0 %729
          %v732 = vadd.f32 %v717, %v730
          %vm733 = vcmask 39936
          %v734 = vsel %vm733, %v717, -inf
          %735 = vmax.xlane.f32.xlu0 %v734
          %v736 = vpop.xlane.xlu0 %735
          %v737 = vsub.f32 %v717, %v736
          %v738 = vmul.f32 %v737, 1.442695
          %v739 = vpow.pop %v738
          %v740 = vsel %vm733, %v739, 0.0
          %741 = vadd.xlane.f32.xlu0 %v740
          %v742 = vpop.xlane.xlu0 %741
          %v743 = vrcp.pop %v742
          %v744 = vmul.f32 %v742, %v743
          %v745 = vsub.f32 1.0, %v744
          %v746 = vmul.f32 %v743, %v745
          %v747 = vadd.f32 %v743, %v746
          %vm748 = vweird.f32 %v742
          %vm749 = vweird.f32 %v743
          %vm750 = vmor %vm748, %vm749
          %v751 = vsel %vm750, %v743, %v747
          %v752 = vand.u32 2147483647, %v742
          %vm753 = vcmp.eq.f32.partialorder %v752, 8.507059e+37
          %v754 = vand.u32 %v742, 2147483648
          %v755 = vor.u32 1.1754944e-38, %v754
          %v756 = vsel %vm753, %v755, %v751
          %v757 = vmul.f32 %v739, %v756
          %vm758 = vcmp.gt.f32.partialorder %v725, 20.0
          %v759 = vmin.f32 %v725, 20.0
          %v760 = vmul.f32 %v759, 1.442695
          %v761 = vpow.pop %v760
          %v762 = vadd.f32 %v761, 1.0
          %v763 = vlog2.pop %v762
          %v764 = vmul.f32 %v763, 0.6931472
          %v765 = vmul.f32 -0.5, %v761
          %v766 = vadd.f32 %v765, 1.0
          %v767 = vmul.f32 %v766, %v761
          %v768 = vand.u32 2147483647, %v761
          %vm769 = vcmp.lt.f32.partialorder %v768, 0.0004427343
          %v770 = vsel %vm769, %v767, %v764
          %v771 = vsel %vm758, %v725, %v770
          %vm772 = vcmp.gt.f32.partialorder %v732, 20.0
          %v773 = vmin.f32 %v732, 20.0
          %v774 = vmul.f32 %v773, 1.442695
          %v775 = vpow.pop %v774
          %v776 = vadd.f32 %v775, 1.0
          %v777 = vlog2.pop %v776
          %v778 = vmul.f32 %v777, 0.6931472
          %v779 = vmul.f32 -0.5, %v775
          %v780 = vadd.f32 %v779, 1.0
          %v781 = vmul.f32 %v780, %v775
          %v782 = vand.u32 2147483647, %v775
          %vm783 = vcmp.lt.f32.partialorder %v782, 0.0004427343
          %v784 = vsel %vm783, %v781, %v778
          %v785 = vsel %vm772, %v732, %v784
          %v786 = vmul.f32 %v785, 2.5066283
          %v787 = vld [vmem:[#allocation13] sm:$0xff]
          %789 = vrot.lane.b32.xlu0 %v771, 123
          %v790 = vpop.permute.xlu0 %789
          %v792 = vadd.f32 %v787, %v790
          %793 = vst.msk [vmem:[%s653] sm:$0xff] %vm733, %v792
          %v794 = vlog2.pop %v757
          %v795 = vmul.f32 %v794, 0.6931472
          %v796 = vadd.f32 %v786, 1e-10
          %v797 = vlog2.pop %v796
          %v798 = vmul.f32 %v797, 0.6931472
          %800 = vrot.lane.b32.xlu0 %v798, 118
          %v801 = vpop.permute.xlu0 %800
          %v803 = vsub.f32 %v795, %v801
          %804 = vst.msk [vmem:[#allocation2] sm:$0xff] %vm733, %v803
          %v805 = vmul.f32 %v785, 2.0
          %v806 = vmul.f32 %v805, %v785
          %v807 = vadd.f32 %v806, 1e-10
          %v808 = vrcp.pop %v807
          %v809 = vmul.f32 %v807, %v808
          %v810 = vsub.f32 1.0, %v809
          %v811 = vmul.f32 %v808, %v810
          %v812 = vadd.f32 %v808, %v811
          %vm813 = vweird.f32 %v807
          %vm814 = vweird.f32 %v808
          %vm815 = vmor %vm813, %vm814
          %v816 = vsel %vm815, %v808, %v812
          %v817 = vand.u32 2147483647, %v807
          %vm818 = vcmp.eq.f32.partialorder %v817, 8.507059e+37
          %v819 = vand.u32 %v807, 2147483648
          %v820 = vor.u32 1.1754944e-38, %v819
          %v821 = vsel %vm818, %v820, %v816
          %v822 = vmul.f32 1.0, %v821
          %824 = vrot.lane.b32.xlu0 %v822, 118
          %v825 = vpop.permute.xlu0 %824
          %827 = vst.msk [vmem:[#allocation3] sm:$0xff] %vm733, %v825
          %828 = vst [vmem:[%s622] sm:$0xff] 0.0
        $region92: #{tpu_custom_call.1} parent=55 // pred_fallthru
          _
        %s829 = smul.u32 %s38, 3
        %s830 = sadd.s32 %s829, %s40
        %s831 = smul.u32 %s830, 128
        %s832 = scvt.s32.f32 %s831
        %v833 = vlaneseq
        %v834 = vand.u32 %v833, 127
        %v835 = vcvt.s32.f32 %v834
        %v836 = vstv %s832
        %v837 = vadd.f32 %v836, %v835
        %v838 = vld [vmem:[%s653] sm:$0xff]
        %v839 = vld [vmem:[#allocation2] sm:$0xff]
        %v840 = vld [vmem:[#allocation3] sm:$0xff]
        %842 = vset.pattern.permute.xlu0 0
        %843 = vperm.xlu0 %842, %v838
        %v844 = vpop.permute.xlu0 %843
        %v846 = vsub.f32 %v837, %v844
        %v847 = vmul.f32 %v846, %v846
        %849 = vset.pattern.permute.xlu0 0
        %850 = vperm.xlu0 %849, %v840
        %v851 = vpop.permute.xlu0 %850
        %v853 = vmul.f32 %v847, %v851
        %855 = vset.pattern.permute.xlu0 0
        %856 = vperm.xlu0 %855, %v839
        %v857 = vpop.permute.xlu0 %856
        %v859 = vsub.f32 %v857, %v853
        %v860 = vmul.f32 %v859, 1.442695
        %v861 = vpow.pop %v860
        %v862 = vadd.f32 %v861, 0.0
        %863 = vset.pattern.permute.xlu0 1
        %864 = vperm.xlu0 %863, %v838
        %v865 = vpop.permute.xlu0 %864
        %v867 = vsub.f32 %v837, %v865
        %v868 = vmul.f32 %v867, %v867
        %869 = vset.pattern.permute.xlu0 1
        %870 = vperm.xlu0 %869, %v840
        %v871 = vpop.permute.xlu0 %870
        %v873 = vmul.f32 %v868, %v871
        %874 = vset.pattern.permute.xlu0 1
        %875 = vperm.xlu0 %874, %v839
        %v876 = vpop.permute.xlu0 %875
        %v878 = vsub.f32 %v876, %v873
        %v879 = vmul.f32 %v878, 1.442695
        %v880 = vpow.pop %v879
        %v881 = vadd.f32 %v862, %v880
        %882 = vset.pattern.permute.xlu0 2
        %883 = vperm.xlu0 %882, %v838
        %v884 = vpop.permute.xlu0 %883
        %v886 = vsub.f32 %v837, %v884
        %v887 = vmul.f32 %v886, %v886
        %888 = vset.pattern.permute.xlu0 2
        %889 = vperm.xlu0 %888, %v840
        %v890 = vpop.permute.xlu0 %889
        %v892 = vmul.f32 %v887, %v890
        %893 = vset.pattern.permute.xlu0 2
        %894 = vperm.xlu0 %893, %v839
        %v895 = vpop.permute.xlu0 %894
        %v897 = vsub.f32 %v895, %v892
        %v898 = vmul.f32 %v897, 1.442695
        %v899 = vpow.pop %v898
        %v900 = vadd.f32 %v881, %v899
        %901 = vset.pattern.permute.xlu0 3
        %902 = vperm.xlu0 %901, %v838
        %v903 = vpop.permute.xlu0 %902
        %v905 = vsub.f32 %v837, %v903
        %v906 = vmul.f32 %v905, %v905
        %907 = vset.pattern.permute.xlu0 3
        %908 = vperm.xlu0 %907, %v840
        %v909 = vpop.permute.xlu0 %908
        %v911 = vmul.f32 %v906, %v909
        %912 = vset.pattern.permute.xlu0 3
        %913 = vperm.xlu0 %912, %v839
        %v914 = vpop.permute.xlu0 %913
        %v916 = vsub.f32 %v914, %v911
        %v917 = vmul.f32 %v916, 1.442695
        %v918 = vpow.pop %v917
        %v919 = vadd.f32 %v900, %v918
        %920 = vset.pattern.permute.xlu0 4
        %921 = vperm.xlu0 %920, %v838
        %v922 = vpop.permute.xlu0 %921
        %v924 = vsub.f32 %v837, %v922
        %v925 = vmul.f32 %v924, %v924
        %926 = vset.pattern.permute.xlu0 4
        %927 = vperm.xlu0 %926, %v840
        %v928 = vpop.permute.xlu0 %927
        %v930 = vmul.f32 %v925, %v928
        %931 = vset.pattern.permute.xlu0 4
        %932 = vperm.xlu0 %931, %v839
        %v933 = vpop.permute.xlu0 %932
        %v935 = vsub.f32 %v933, %v930
        %v936 = vmul.f32 %v935, 1.442695
        %v937 = vpow.pop %v936
        %v938 = vadd.f32 %v919, %v937
        %v939 = vld [vmem:[%s582] sm:$0xff]
        %v940 = vmul.f32 %v938, %v939
        %941 = vst [vmem:[%s629] sm:$0xff] %v940
        %v942 = vld [vmem:[%s622] sm:$0xff]
        %v943 = vpack.c.bf16 %v940, %v940
        %v945 = vrot.slane %v943, 3
        %vm946 = vcmask 1040384
        %v949 = vsel %vm946, %v943, %v945
        %vm951 = vcmask 1041409
        %v952 = vsel %vm951, %v943, %v945
        %v954 = vrot.slane %v952, 1
        %vm955 = vcmask 1042434
        %v956 = vsel %vm955, %v943, %v945
        %v958 = vrot.slane %v956, 2
        %vm959 = vcmask 1043459
        %v960 = vsel %vm959, %v943, %v945
        %v962 = vrot.slane %v960, 3
        %v963 = vunpack.i.l.s16 %v949
        %v964 = vunpack.i.h.s16 %v949
        %v965 = vunpack.i.l.s16 %v954
        %v966 = vunpack.i.h.s16 %v954
        %v967 = vunpack.i.l.s16 %v958
        %v968 = vunpack.i.h.s16 %v958
        %v969 = vunpack.i.l.s16 %v962
        %v970 = vunpack.i.h.s16 %v962
        %v971 = vld [vmem:[%s572] sm:$0xf]
        %v972 = vld [vmem:[%s572 + $0x4] sm:$0xf]
        %v973 = vld [vmem:[%s572 + $0x8] sm:$0xf]
        %v974 = vld [vmem:[%s572 + $0xc] sm:$0xf]
        %v975 = vld [vmem:[%s572 + $0x10] sm:$0xf]
        %v976 = vld [vmem:[%s572 + $0x14] sm:$0xf]
        %v977 = vld [vmem:[%s572 + $0x18] sm:$0xf]
        %v978 = vld [vmem:[%s572 + $0x1c] sm:$0xf]
        %v979 = vld [vmem:[%s572 + $0x20] sm:$0xf]
        %v980 = vld [vmem:[%s572 + $0x24] sm:$0xf]
        %v981 = vld [vmem:[%s572 + $0x28] sm:$0xf]
        %v982 = vld [vmem:[%s572 + $0x2c] sm:$0xf]
        %v983 = vld [vmem:[%s572 + $0x30] sm:$0xf]
        %v984 = vld [vmem:[%s572 + $0x34] sm:$0xf]
        %v985 = vld [vmem:[%s572 + $0x38] sm:$0xf]
        %v986 = vld [vmem:[%s572 + $0x3c] sm:$0xf]
        %v987 = vld [vmem:[%s572 + $0x40] sm:$0xf]
        %v988 = vld [vmem:[%s572 + $0x44] sm:$0xf]
        %v989 = vld [vmem:[%s572 + $0x48] sm:$0xf]
        %v990 = vld [vmem:[%s572 + $0x4c] sm:$0xf]
        %v991 = vld [vmem:[%s572 + $0x50] sm:$0xf]
        %v992 = vld [vmem:[%s572 + $0x54] sm:$0xf]
        %v993 = vld [vmem:[%s572 + $0x58] sm:$0xf]
        %v994 = vld [vmem:[%s572 + $0x5c] sm:$0xf]
        %v995 = vld [vmem:[%s572 + $0x60] sm:$0xf]
        %v996 = vld [vmem:[%s572 + $0x64] sm:$0xf]
        %v997 = vld [vmem:[%s572 + $0x68] sm:$0xf]
        %v998 = vld [vmem:[%s572 + $0x6c] sm:$0xf]
        %v999 = vld [vmem:[%s572 + $0x70] sm:$0xf]
        %v1000 = vld [vmem:[%s572 + $0x74] sm:$0xf]
        %v1001 = vld [vmem:[%s572 + $0x78] sm:$0xf]
        %v1002 = vld [vmem:[%s572 + $0x7c] sm:$0xf]
        %v1003 = vld [vmem:[%s572 + $0x80] sm:$0xf]
        %v1004 = vld [vmem:[%s572 + $0x84] sm:$0xf]
        %v1005 = vld [vmem:[%s572 + $0x88] sm:$0xf]
        %v1006 = vld [vmem:[%s572 + $0x8c] sm:$0xf]
        %v1007 = vld [vmem:[%s572 + $0x90] sm:$0xf]
        %v1008 = vld [vmem:[%s572 + $0x94] sm:$0xf]
        %v1009 = vld [vmem:[%s572 + $0x98] sm:$0xf]
        %v1010 = vld [vmem:[%s572 + $0x9c] sm:$0xf]
        %v1011 = vld [vmem:[%s572 + $0xa0] sm:$0xf]
        %v1012 = vld [vmem:[%s572 + $0xa4] sm:$0xf]
        %v1013 = vld [vmem:[%s572 + $0xa8] sm:$0xf]
        %v1014 = vld [vmem:[%s572 + $0xac] sm:$0xf]
        %v1015 = vld [vmem:[%s572 + $0xb0] sm:$0xf]
        %v1016 = vld [vmem:[%s572 + $0xb4] sm:$0xf]
        %v1017 = vld [vmem:[%s572 + $0xb8] sm:$0xf]
        %v1018 = vld [vmem:[%s572 + $0xbc] sm:$0xf]
        %v1019 = vld [vmem:[%s572 + $0xc0] sm:$0xf]
        %v1020 = vld [vmem:[%s572 + $0xc4] sm:$0xf]
        %v1021 = vld [vmem:[%s572 + $0xc8] sm:$0xf]
        %v1022 = vld [vmem:[%s572 + $0xcc] sm:$0xf]
        %v1023 = vld [vmem:[%s572 + $0xd0] sm:$0xf]
        %v1024 = vld [vmem:[%s572 + $0xd4] sm:$0xf]
        %v1025 = vld [vmem:[%s572 + $0xd8] sm:$0xf]
        %v1026 = vld [vmem:[%s572 + $0xdc] sm:$0xf]
        %v1027 = vld [vmem:[%s572 + $0xe0] sm:$0xf]
        %v1028 = vld [vmem:[%s572 + $0xe4] sm:$0xf]
        %v1029 = vld [vmem:[%s572 + $0xe8] sm:$0xf]
        %v1030 = vld [vmem:[%s572 + $0xec] sm:$0xf]
        %v1031 = vld [vmem:[%s572 + $0xf0] sm:$0xf]
        %v1032 = vld [vmem:[%s572 + $0xf4] sm:$0xf]
        %v1033 = vld [vmem:[%s572 + $0xf8] sm:$0xf]
        %v1034 = vld [vmem:[%s572 + $0xfc] sm:$0xf]
        %v1035 = vld [vmem:[%s572 + $0x100] sm:$0xf]
        %v1036 = vld [vmem:[%s572 + $0x104] sm:$0xf]
        %v1037 = vld [vmem:[%s572 + $0x108] sm:$0xf]
        %v1038 = vld [vmem:[%s572 + $0x10c] sm:$0xf]
        %v1039 = vld [vmem:[%s572 + $0x110] sm:$0xf]
        %v1040 = vld [vmem:[%s572 + $0x114] sm:$0xf]
        %v1041 = vld [vmem:[%s572 + $0x118] sm:$0xf]
        %v1042 = vld [vmem:[%s572 + $0x11c] sm:$0xf]
        %v1043 = vld [vmem:[%s572 + $0x120] sm:$0xf]
        %v1044 = vld [vmem:[%s572 + $0x124] sm:$0xf]
        %v1045 = vld [vmem:[%s572 + $0x128] sm:$0xf]
        %v1046 = vld [vmem:[%s572 + $0x12c] sm:$0xf]
        %v1047 = vld [vmem:[%s572 + $0x130] sm:$0xf]
        %v1048 = vld [vmem:[%s572 + $0x134] sm:$0xf]
        %v1049 = vld [vmem:[%s572 + $0x138] sm:$0xf]
        %v1050 = vld [vmem:[%s572 + $0x13c] sm:$0xf]
        %v1051 = vld [vmem:[%s572 + $0x140] sm:$0xf]
        %v1052 = vld [vmem:[%s572 + $0x144] sm:$0xf]
        %v1053 = vld [vmem:[%s572 + $0x148] sm:$0xf]
        %v1054 = vld [vmem:[%s572 + $0x14c] sm:$0xf]
        %v1055 = vld [vmem:[%s572 + $0x150] sm:$0xf]
        %v1056 = vld [vmem:[%s572 + $0x154] sm:$0xf]
        %v1057 = vld [vmem:[%s572 + $0x158] sm:$0xf]
        %v1058 = vld [vmem:[%s572 + $0x15c] sm:$0xf]
        %v1059 = vld [vmem:[%s572 + $0x160] sm:$0xf]
        %v1060 = vld [vmem:[%s572 + $0x164] sm:$0xf]
        %v1061 = vld [vmem:[%s572 + $0x168] sm:$0xf]
        %v1062 = vld [vmem:[%s572 + $0x16c] sm:$0xf]
        %v1063 = vld [vmem:[%s572 + $0x170] sm:$0xf]
        %v1064 = vld [vmem:[%s572 + $0x174] sm:$0xf]
        %v1065 = vld [vmem:[%s572 + $0x178] sm:$0xf]
        %v1066 = vld [vmem:[%s572 + $0x17c] sm:$0xf]
        %v1067 = vld [vmem:[%s572 + $0x180] sm:$0xf]
        %v1068 = vld [vmem:[%s572 + $0x184] sm:$0xf]
        %v1069 = vld [vmem:[%s572 + $0x188] sm:$0xf]
        %v1070 = vld [vmem:[%s572 + $0x18c] sm:$0xf]
        %v1071 = vld [vmem:[%s572 + $0x190] sm:$0xf]
        %v1072 = vld [vmem:[%s572 + $0x194] sm:$0xf]
        %v1073 = vld [vmem:[%s572 + $0x198] sm:$0xf]
        %v1074 = vld [vmem:[%s572 + $0x19c] sm:$0xf]
        %v1075 = vld [vmem:[%s572 + $0x1a0] sm:$0xf]
        %v1076 = vld [vmem:[%s572 + $0x1a4] sm:$0xf]
        %v1077 = vld [vmem:[%s572 + $0x1a8] sm:$0xf]
        %v1078 = vld [vmem:[%s572 + $0x1ac] sm:$0xf]
        %v1079 = vld [vmem:[%s572 + $0x1b0] sm:$0xf]
        %v1080 = vld [vmem:[%s572 + $0x1b4] sm:$0xf]
        %v1081 = vld [vmem:[%s572 + $0x1b8] sm:$0xf]
        %v1082 = vld [vmem:[%s572 + $0x1bc] sm:$0xf]
        %v1083 = vld [vmem:[%s572 + $0x1c0] sm:$0xf]
        %v1084 = vld [vmem:[%s572 + $0x1c4] sm:$0xf]
        %v1085 = vld [vmem:[%s572 + $0x1c8] sm:$0xf]
        %v1086 = vld [vmem:[%s572 + $0x1cc] sm:$0xf]
        %v1087 = vld [vmem:[%s572 + $0x1d0] sm:$0xf]
        %v1088 = vld [vmem:[%s572 + $0x1d4] sm:$0xf]
        %v1089 = vld [vmem:[%s572 + $0x1d8] sm:$0xf]
        %v1090 = vld [vmem:[%s572 + $0x1dc] sm:$0xf]
        %v1091 = vld [vmem:[%s572 + $0x1e0] sm:$0xf]
        %v1092 = vld [vmem:[%s572 + $0x1e4] sm:$0xf]
        %v1093 = vld [vmem:[%s572 + $0x1e8] sm:$0xf]
        %v1094 = vld [vmem:[%s572 + $0x1ec] sm:$0xf]
        %v1095 = vld [vmem:[%s572 + $0x1f0] sm:$0xf]
        %v1096 = vld [vmem:[%s572 + $0x1f4] sm:$0xf]
        %v1097 = vld [vmem:[%s572 + $0x1f8] sm:$0xf]
        %v1098 = vld [vmem:[%s572 + $0x1fc] sm:$0xf]
        %v1099 = vpack.i.b16 %v963, %v963
        %v1100 = vperm.slane %v1099, 0
        %v1118 = vunpack.c.l.b16 %v971
        %v1119 = vunpack.c.l.b16 %v972
        %v1120 = vunpack.c.l.b16 %v973
        %v1121 = vunpack.c.l.b16 %v974
        %v1122 = vunpack.c.l.b16 %v975
        %v1123 = vunpack.c.l.b16 %v976
        %v1124 = vunpack.c.l.b16 %v977
        %v1125 = vunpack.c.l.b16 %v978
        %v1126 = vunpack.c.l.b16 %v979
        %v1127 = vunpack.c.l.b16 %v980
        %v1128 = vunpack.c.l.b16 %v981
        %v1129 = vunpack.c.l.b16 %v982
        %v1130 = vunpack.c.l.b16 %v983
        %v1131 = vunpack.c.l.b16 %v984
        %v1132 = vunpack.c.l.b16 %v985
        %v1133 = vunpack.c.l.b16 %v986
        %v1134 = vpack.c.b16 %v1119, %v1118
        %v1135 = vpack.c.b16 %v1121, %v1120
        %v1136 = vpack.c.b16 %v1123, %v1122
        %v1137 = vpack.c.b16 %v1125, %v1124
        %v1138 = vpack.c.b16 %v1127, %v1126
        %v1139 = vpack.c.b16 %v1129, %v1128
        %v1140 = vpack.c.b16 %v1131, %v1130
        %v1141 = vpack.c.b16 %v1133, %v1132
        %1150 = vmatpush.bf16.msra.mxu0 %v1141
        %1151 = vmatpush.bf16.msra.mxu0 %v1140
        %1152 = vmatpush.bf16.msra.mxu0 %v1139
        %1153 = vmatpush.bf16.msra.mxu0 %v1138
        %1154 = vmatpush.bf16.msra.mxu0 %v1137
        %1155 = vmatpush.bf16.msra.mxu0 %v1136
        %1156 = vmatpush.bf16.msra.mxu0 %v1135
        %1157 = vmatpush.bf16.msra.mxu0 %v1134
        %1158 = vmatmul.bf16.gmra.mxu0 %v1100
        %v1159 = vpop.f32.mrf.mxu0
        %v1160 = vadd.f32 0.0, %v1159
        %v1161 = vpop.f32.mrf.mxu0
        %1162 = vdwg.mxu0
        %v1163 = vpack.i.b16 %v964, %v964
        %v1164 = vperm.slane %v1163, 0
        %v1182 = vunpack.c.l.b16 %v987
        %v1183 = vunpack.c.l.b16 %v988
        %v1184 = vunpack.c.l.b16 %v989
        %v1185 = vunpack.c.l.b16 %v990
        %v1186 = vunpack.c.l.b16 %v991
        %v1187 = vunpack.c.l.b16 %v992
        %v1188 = vunpack.c.l.b16 %v993
        %v1189 = vunpack.c.l.b16 %v994
        %v1190 = vunpack.c.l.b16 %v995
        %v1191 = vunpack.c.l.b16 %v996
        %v1192 = vunpack.c.l.b16 %v997
        %v1193 = vunpack.c.l.b16 %v998
        %v1194 = vunpack.c.l.b16 %v999
        %v1195 = vunpack.c.l.b16 %v1000
        %v1196 = vunpack.c.l.b16 %v1001
        %v1197 = vunpack.c.l.b16 %v1002
        %v1198 = vpack.c.b16 %v1183, %v1182
        %v1199 = vpack.c.b16 %v1185, %v1184
        %v1200 = vpack.c.b16 %v1187, %v1186
        %v1201 = vpack.c.b16 %v1189, %v1188
        %v1202 = vpack.c.b16 %v1191, %v1190
        %v1203 = vpack.c.b16 %v1193, %v1192
        %v1204 = vpack.c.b16 %v1195, %v1194
        %v1205 = vpack.c.b16 %v1197, %v1196
        %1214 = vmatpush.bf16.msra.mxu0 %v1205
        %1215 = vmatpush.bf16.msra.mxu0 %v1204
        %1216 = vmatpush.bf16.msra.mxu0 %v1203
        %1217 = vmatpush.bf16.msra.mxu0 %v1202
        %1218 = vmatpush.bf16.msra.mxu0 %v1201
        %1219 = vmatpush.bf16.msra.mxu0 %v1200
        %1220 = vmatpush.bf16.msra.mxu0 %v1199
        %1221 = vmatpush.bf16.msra.mxu0 %v1198
        %1222 = vmatmul.bf16.gmra.mxu0 %v1164
        %v1223 = vpop.f32.mrf.mxu0
        %v1224 = vadd.f32 0.0, %v1223
        %v1225 = vpop.f32.mrf.mxu0
        %1226 = vdwg.mxu0
        %v1227 = vpack.i.b16 %v965, %v965
        %v1228 = vperm.slane %v1227, 0
        %v1246 = vunpack.c.l.b16 %v1003
        %v1247 = vunpack.c.l.b16 %v1004
        %v1248 = vunpack.c.l.b16 %v1005
        %v1249 = vunpack.c.l.b16 %v1006
        %v1250 = vunpack.c.l.b16 %v1007
        %v1251 = vunpack.c.l.b16 %v1008
        %v1252 = vunpack.c.l.b16 %v1009
        %v1253 = vunpack.c.l.b16 %v1010
        %v1254 = vunpack.c.l.b16 %v1011
        %v1255 = vunpack.c.l.b16 %v1012
        %v1256 = vunpack.c.l.b16 %v1013
        %v1257 = vunpack.c.l.b16 %v1014
        %v1258 = vunpack.c.l.b16 %v1015
        %v1259 = vunpack.c.l.b16 %v1016
        %v1260 = vunpack.c.l.b16 %v1017
        %v1261 = vunpack.c.l.b16 %v1018
        %v1262 = vpack.c.b16 %v1247, %v1246
        %v1263 = vpack.c.b16 %v1249, %v1248
        %v1264 = vpack.c.b16 %v1251, %v1250
        %v1265 = vpack.c.b16 %v1253, %v1252
        %v1266 = vpack.c.b16 %v1255, %v1254
        %v1267 = vpack.c.b16 %v1257, %v1256
        %v1268 = vpack.c.b16 %v1259, %v1258
        %v1269 = vpack.c.b16 %v1261, %v1260
        %1278 = vmatpush.bf16.msra.mxu0 %v1269
        %1279 = vmatpush.bf16.msra.mxu0 %v1268
        %1280 = vmatpush.bf16.msra.mxu0 %v1267
        %1281 = vmatpush.bf16.msra.mxu0 %v1266
        %1282 = vmatpush.bf16.msra.mxu0 %v1265
        %1283 = vmatpush.bf16.msra.mxu0 %v1264
        %1284 = vmatpush.bf16.msra.mxu0 %v1263
        %1285 = vmatpush.bf16.msra.mxu0 %v1262
        %1286 = vmatmul.bf16.gmra.mxu0 %v1228
        %v1287 = vpop.f32.mrf.mxu0
        %v1288 = vadd.f32 0.0, %v1287
        %v1289 = vpop.f32.mrf.mxu0
        %1290 = vdwg.mxu0
        %v1291 = vpack.i.b16 %v966, %v966
        %v1292 = vperm.slane %v1291, 0
        %v1310 = vunpack.c.l.b16 %v1019
        %v1311 = vunpack.c.l.b16 %v1020
        %v1312 = vunpack.c.l.b16 %v1021
        %v1313 = vunpack.c.l.b16 %v1022
        %v1314 = vunpack.c.l.b16 %v1023
        %v1315 = vunpack.c.l.b16 %v1024
        %v1316 = vunpack.c.l.b16 %v1025
        %v1317 = vunpack.c.l.b16 %v1026
        %v1318 = vunpack.c.l.b16 %v1027
        %v1319 = vunpack.c.l.b16 %v1028
        %v1320 = vunpack.c.l.b16 %v1029
        %v1321 = vunpack.c.l.b16 %v1030
        %v1322 = vunpack.c.l.b16 %v1031
        %v1323 = vunpack.c.l.b16 %v1032
        %v1324 = vunpack.c.l.b16 %v1033
        %v1325 = vunpack.c.l.b16 %v1034
        %v1326 = vpack.c.b16 %v1311, %v1310
        %v1327 = vpack.c.b16 %v1313, %v1312
        %v1328 = vpack.c.b16 %v1315, %v1314
        %v1329 = vpack.c.b16 %v1317, %v1316
        %v1330 = vpack.c.b16 %v1319, %v1318
        %v1331 = vpack.c.b16 %v1321, %v1320
        %v1332 = vpack.c.b16 %v1323, %v1322
        %v1333 = vpack.c.b16 %v1325, %v1324
        %1342 = vmatpush.bf16.msra.mxu0 %v1333
        %1343 = vmatpush.bf16.msra.mxu0 %v1332
        %1344 = vmatpush.bf16.msra.mxu0 %v1331
        %1345 = vmatpush.bf16.msra.mxu0 %v1330
        %1346 = vmatpush.bf16.msra.mxu0 %v1329
        %1347 = vmatpush.bf16.msra.mxu0 %v1328
        %1348 = vmatpush.bf16.msra.mxu0 %v1327
        %1349 = vmatpush.bf16.msra.mxu0 %v1326
        %1350 = vmatmul.bf16.gmra.mxu0 %v1292
        %v1351 = vpop.f32.mrf.mxu0
        %v1352 = vadd.f32 0.0, %v1351
        %v1353 = vpop.f32.mrf.mxu0
        %1354 = vdwg.mxu0
        %v1355 = vpack.i.b16 %v967, %v967
        %v1356 = vperm.slane %v1355, 0
        %v1374 = vunpack.c.l.b16 %v1035
        %v1375 = vunpack.c.l.b16 %v1036
        %v1376 = vunpack.c.l.b16 %v1037
        %v1377 = vunpack.c.l.b16 %v1038
        %v1378 = vunpack.c.l.b16 %v1039
        %v1379 = vunpack.c.l.b16 %v1040
        %v1380 = vunpack.c.l.b16 %v1041
        %v1381 = vunpack.c.l.b16 %v1042
        %v1382 = vunpack.c.l.b16 %v1043
        %v1383 = vunpack.c.l.b16 %v1044
        %v1384 = vunpack.c.l.b16 %v1045
        %v1385 = vunpack.c.l.b16 %v1046
        %v1386 = vunpack.c.l.b16 %v1047
        %v1387 = vunpack.c.l.b16 %v1048
        %v1388 = vunpack.c.l.b16 %v1049
        %v1389 = vunpack.c.l.b16 %v1050
        %v1390 = vpack.c.b16 %v1375, %v1374
        %v1391 = vpack.c.b16 %v1377, %v1376
        %v1392 = vpack.c.b16 %v1379, %v1378
        %v1393 = vpack.c.b16 %v1381, %v1380
        %v1394 = vpack.c.b16 %v1383, %v1382
        %v1395 = vpack.c.b16 %v1385, %v1384
        %v1396 = vpack.c.b16 %v1387, %v1386
        %v1397 = vpack.c.b16 %v1389, %v1388
        %1406 = vmatpush.bf16.msra.mxu0 %v1397
        %1407 = vmatpush.bf16.msra.mxu0 %v1396
        %1408 = vmatpush.bf16.msra.mxu0 %v1395
        %1409 = vmatpush.bf16.msra.mxu0 %v1394
        %1410 = vmatpush.bf16.msra.mxu0 %v1393
        %1411 = vmatpush.bf16.msra.mxu0 %v1392
        %1412 = vmatpush.bf16.msra.mxu0 %v1391
        %1413 = vmatpush.bf16.msra.mxu0 %v1390
        %1414 = vmatmul.bf16.gmra.mxu0 %v1356
        %v1415 = vpop.f32.mrf.mxu0
        %v1416 = vadd.f32 0.0, %v1415
        %v1417 = vpop.f32.mrf.mxu0
        %1418 = vdwg.mxu0
        %v1419 = vpack.i.b16 %v968, %v968
        %v1420 = vperm.slane %v1419, 0
        %v1438 = vunpack.c.l.b16 %v1051
        %v1439 = vunpack.c.l.b16 %v1052
        %v1440 = vunpack.c.l.b16 %v1053
        %v1441 = vunpack.c.l.b16 %v1054
        %v1442 = vunpack.c.l.b16 %v1055
        %v1443 = vunpack.c.l.b16 %v1056
        %v1444 = vunpack.c.l.b16 %v1057
        %v1445 = vunpack.c.l.b16 %v1058
        %v1446 = vunpack.c.l.b16 %v1059
        %v1447 = vunpack.c.l.b16 %v1060
        %v1448 = vunpack.c.l.b16 %v1061
        %v1449 = vunpack.c.l.b16 %v1062
        %v1450 = vunpack.c.l.b16 %v1063
        %v1451 = vunpack.c.l.b16 %v1064
        %v1452 = vunpack.c.l.b16 %v1065
        %v1453 = vunpack.c.l.b16 %v1066
        %v1454 = vpack.c.b16 %v1439, %v1438
        %v1455 = vpack.c.b16 %v1441, %v1440
        %v1456 = vpack.c.b16 %v1443, %v1442
        %v1457 = vpack.c.b16 %v1445, %v1444
        %v1458 = vpack.c.b16 %v1447, %v1446
        %v1459 = vpack.c.b16 %v1449, %v1448
        %v1460 = vpack.c.b16 %v1451, %v1450
        %v1461 = vpack.c.b16 %v1453, %v1452
        %1470 = vmatpush.bf16.msra.mxu0 %v1461
        %1471 = vmatpush.bf16.msra.mxu0 %v1460
        %1472 = vmatpush.bf16.msra.mxu0 %v1459
        %1473 = vmatpush.bf16.msra.mxu0 %v1458
        %1474 = vmatpush.bf16.msra.mxu0 %v1457
        %1475 = vmatpush.bf16.msra.mxu0 %v1456
        %1476 = vmatpush.bf16.msra.mxu0 %v1455
        %1477 = vmatpush.bf16.msra.mxu0 %v1454
        %1478 = vmatmul.bf16.gmra.mxu0 %v1420
        %v1479 = vpop.f32.mrf.mxu0
        %v1480 = vadd.f32 0.0, %v1479
        %v1481 = vpop.f32.mrf.mxu0
        %1482 = vdwg.mxu0
        %v1483 = vpack.i.b16 %v969, %v969
        %v1484 = vperm.slane %v1483, 0
        %v1502 = vunpack.c.l.b16 %v1067
        %v1503 = vunpack.c.l.b16 %v1068
        %v1504 = vunpack.c.l.b16 %v1069
        %v1505 = vunpack.c.l.b16 %v1070
        %v1506 = vunpack.c.l.b16 %v1071
        %v1507 = vunpack.c.l.b16 %v1072
        %v1508 = vunpack.c.l.b16 %v1073
        %v1509 = vunpack.c.l.b16 %v1074
        %v1510 = vunpack.c.l.b16 %v1075
        %v1511 = vunpack.c.l.b16 %v1076
        %v1512 = vunpack.c.l.b16 %v1077
        %v1513 = vunpack.c.l.b16 %v1078
        %v1514 = vunpack.c.l.b16 %v1079
        %v1515 = vunpack.c.l.b16 %v1080
        %v1516 = vunpack.c.l.b16 %v1081
        %v1517 = vunpack.c.l.b16 %v1082
        %v1518 = vpack.c.b16 %v1503, %v1502
        %v1519 = vpack.c.b16 %v1505, %v1504
        %v1520 = vpack.c.b16 %v1507, %v1506
        %v1521 = vpack.c.b16 %v1509, %v1508
        %v1522 = vpack.c.b16 %v1511, %v1510
        %v1523 = vpack.c.b16 %v1513, %v1512
        %v1524 = vpack.c.b16 %v1515, %v1514
        %v1525 = vpack.c.b16 %v1517, %v1516
        %1534 = vmatpush.bf16.msra.mxu0 %v1525
        %1535 = vmatpush.bf16.msra.mxu0 %v1524
        %1536 = vmatpush.bf16.msra.mxu0 %v1523
        %1537 = vmatpush.bf16.msra.mxu0 %v1522
        %1538 = vmatpush.bf16.msra.mxu0 %v1521
        %1539 = vmatpush.bf16.msra.mxu0 %v1520
        %1540 = vmatpush.bf16.msra.mxu0 %v1519
        %1541 = vmatpush.bf16.msra.mxu0 %v1518
        %1542 = vmatmul.bf16.gmra.mxu0 %v1484
        %v1543 = vpop.f32.mrf.mxu0
        %v1544 = vadd.f32 0.0, %v1543
        %v1545 = vpop.f32.mrf.mxu0
        %1546 = vdwg.mxu0
        %v1547 = vpack.i.b16 %v970, %v970
        %v1548 = vperm.slane %v1547, 0
        %v1566 = vunpack.c.l.b16 %v1083
        %v1567 = vunpack.c.l.b16 %v1084
        %v1568 = vunpack.c.l.b16 %v1085
        %v1569 = vunpack.c.l.b16 %v1086
        %v1570 = vunpack.c.l.b16 %v1087
        %v1571 = vunpack.c.l.b16 %v1088
        %v1572 = vunpack.c.l.b16 %v1089
        %v1573 = vunpack.c.l.b16 %v1090
        %v1574 = vunpack.c.l.b16 %v1091
        %v1575 = vunpack.c.l.b16 %v1092
        %v1576 = vunpack.c.l.b16 %v1093
        %v1577 = vunpack.c.l.b16 %v1094
        %v1578 = vunpack.c.l.b16 %v1095
        %v1579 = vunpack.c.l.b16 %v1096
        %v1580 = vunpack.c.l.b16 %v1097
        %v1581 = vunpack.c.l.b16 %v1098
        %v1582 = vpack.c.b16 %v1567, %v1566
        %v1583 = vpack.c.b16 %v1569, %v1568
        %v1584 = vpack.c.b16 %v1571, %v1570
        %v1585 = vpack.c.b16 %v1573, %v1572
        %v1586 = vpack.c.b16 %v1575, %v1574
        %v1587 = vpack.c.b16 %v1577, %v1576
        %v1588 = vpack.c.b16 %v1579, %v1578
        %v1589 = vpack.c.b16 %v1581, %v1580
        %1598 = vmatpush.bf16.msra.mxu0 %v1589
        %1599 = vmatpush.bf16.msra.mxu0 %v1588
        %1600 = vmatpush.bf16.msra.mxu0 %v1587
        %1601 = vmatpush.bf16.msra.mxu0 %v1586
        %1602 = vmatpush.bf16.msra.mxu0 %v1585
        %1603 = vmatpush.bf16.msra.mxu0 %v1584
        %1604 = vmatpush.bf16.msra.mxu0 %v1583
        %1605 = vmatpush.bf16.msra.mxu0 %v1582
        %1606 = vmatmul.bf16.gmra.mxu0 %v1548
        %v1607 = vpop.f32.mrf.mxu0
        %v1608 = vadd.f32 0.0, %v1607
        %v1609 = vpop.f32.mrf.mxu0
        %1610 = vdwg.mxu0
        %v1619 = vrot.slane %v1224, 7
        %v1620 = vsel %vm951, %v1619, %v1160
        %v1621 = vrot.slane %v1288, 6
        %v1622 = vsel %vm955, %v1621, %v1620
        %v1623 = vrot.slane %v1352, 5
        %v1624 = vsel %vm959, %v1623, %v1622
        %v1625 = vrot.slane %v1416, 4
        %vm1626 = vcmask 1044484
        %v1627 = vsel %vm1626, %v1625, %v1624
        %v1628 = vrot.slane %v1480, 3
        %vm1629 = vcmask 1045509
        %v1630 = vsel %vm1629, %v1628, %v1627
        %v1631 = vrot.slane %v1544, 2
        %vm1632 = vcmask 1046534
        %v1633 = vsel %vm1632, %v1631, %v1630
        %v1634 = vrot.slane %v1608, 1
        %vm1635 = vcmask 1047559
        %v1636 = vsel %vm1635, %v1634, %v1633
        %v1638 = vadd.f32 %v942, %v1636
        %1639 = vst [vmem:[%s622] sm:$0xff] %v1638
        %s1640 = sand.u32 %s283, 1
        %s1641 = scalar_lea.sflag [#allocation6], %s1640
        %s1642 = sand.u32 %s283, 1
        %s1643 = smul.addr %s1642, 8
        %s1644 = scalar_lea.vmem [#allocation17], %s1643
        %s1645 = sand.u32 %s315, 1
        %s1646 = scalar_lea.sflag [#allocation19], %s1645
        %s1647 = sand.u32 %s315, 1
        %s1648 = smul.addr %s1647, 8
        %s1649 = scalar_lea.vmem [#allocation18], %s1648
        %p1650 = scmp.lt.s32.totalorder %s38, 1
        %s1651 = scalar_select %p1650, %s38, 1
        %p1652 = scmp.lt.s32.totalorder %s39, 0
        %s1653 = scalar_select %p1652, %s39, 0
        %s1654 = sadd.s32 %s1653, %s1651
        %s1655 = smul.addr %s1654, 8
        %s1656 = scalar_lea.vmem %s11, %s1655
        // Predicated region
        $region93: #{tpu_custom_call.1} parent=55 // pred_check
          %p1657 = pneg %p293
        $region94: #{tpu_custom_call.1} parent=55 // pred_check_branch
          %1659 = sbr.rel (%p1657) target = $region96
        $region95: #{tpu_custom_call.1} parent=55 // pred_region
          %1661 = vsyncadd %s1641, 0
          %s1662 = sadd.s32 %s39, %s38
          %s1663 = smul.addr %s1662, 8
          %s1664 = scalar_lea.hbm %s9, %s1663
          %s1666 = sshll.u32 %s1644, 4
          %s1667 = int_to_ptr.vmem [resolvable:$true] %s1666
          %s1668 = sshll.u32 %s1664, 4
          %s1669 = int_to_ptr.hbm [resolvable:$true] %s1668
          %1671 = dma.vmem_to_hbm [thread:$0]  %s1667, 128, %s1669, %s1641
        $region96: #{tpu_custom_call.1} parent=55 // pred_fallthru
          _
        // Predicated region
        $region97: #{tpu_custom_call.1} parent=55 // pred_check
          %p1672 = pneg %p325
        $region98: #{tpu_custom_call.1} parent=55 // pred_check_branch
          %1674 = sbr.rel (%p1672) target = $region100
        $region99: #{tpu_custom_call.1} parent=55 // pred_region
          %s1675 = smul.u32 %s38, 3
          %s1676 = sadd.s32 %s1675, %s40
          %1678 = vsyncadd %s1646, 0
          %s1679 = smul.addr %s39, 6
          %s1680 = sadd.s32 %s1676, %s1679
          %s1681 = smul.addr %s1680, 8
          %s1682 = scalar_lea.hbm %s10, %s1681
          %s1684 = sshll.u32 %s1649, 4
          %s1685 = int_to_ptr.vmem [resolvable:$true] %s1684
          %s1686 = sshll.u32 %s1682, 4
          %s1687 = int_to_ptr.hbm [resolvable:$true] %s1686
          %1689 = dma.vmem_to_hbm [thread:$0]  %s1685, 128, %s1687, %s1646
        $region100: #{tpu_custom_call.1} parent=55 // pred_fallthru
          _
        // Predicated region
        $region101: #{tpu_custom_call.1} parent=55 // pred_check
          %p1690 = pneg %p353
        $region102: #{tpu_custom_call.1} parent=55 // pred_check_branch
          %1692 = sbr.rel (%p1690) target = $region104
        $region103: #{tpu_custom_call.1} parent=55 // pred_region
          _
        $region104: #{tpu_custom_call.1} parent=55 // pred_fallthru
          _
      $region56: #{tpu_custom_call.1} parent=5 // pred_fallthru
        _
      %p1693 = scmp.le.s32.totalorder 2, %s28
      // Predicated region
      $region105: #{tpu_custom_call.1} parent=5 // pred_check
        %p1694 = pneg %p1693
      $region106: #{tpu_custom_call.1} parent=5 // pred_check_branch
        %1696 = sbr.rel (%p1694) target = $region108
      $region107: #{tpu_custom_call.1} parent=5 // pred_region
        %s1697 = ssub.s32 %s28, 2
        // Predicated region
        $region109: #{tpu_custom_call.1} parent=107 // pred_check
          %p1698 = pneg %p299
        $region110: #{tpu_custom_call.1} parent=107 // pred_check_branch
          %1700 = sbr.rel (%p1698) target = $region112
        $region111: #{tpu_custom_call.1} parent=107 // pred_region
          %s1701 = sand.u32 %s284, 1
          %s1702 = scalar_lea.sflag [#allocation6], %s1701
          %s1703 = sand.u32 %s284, 1
          %s1704 = smul.addr %s1703, 8
          %s1705 = scalar_lea.vmem [#allocation17], %s1704
          %1707 = dma.done %s1702, 128
        $region112: #{tpu_custom_call.1} parent=107 // pred_fallthru
          _
        // Predicated region
        $region113: #{tpu_custom_call.1} parent=107 // pred_check
          %p1708 = pneg %p331
        $region114: #{tpu_custom_call.1} parent=107 // pred_check_branch
          %1710 = sbr.rel (%p1708) target = $region116
        $region115: #{tpu_custom_call.1} parent=107 // pred_region
          %s1711 = sand.u32 %s316, 1
          %s1712 = scalar_lea.sflag [#allocation19], %s1711
          %s1713 = sand.u32 %s316, 1
          %s1714 = smul.addr %s1713, 8
          %s1715 = scalar_lea.vmem [#allocation18], %s1714
          %1717 = dma.done %s1712, 128
        $region116: #{tpu_custom_call.1} parent=107 // pred_fallthru
          _
        // Predicated region
        $region117: #{tpu_custom_call.1} parent=107 // pred_check
          %p1718 = pneg %p359
        $region118: #{tpu_custom_call.1} parent=107 // pred_check_branch
          %1720 = sbr.rel (%p1718) target = $region120
        $region119: #{tpu_custom_call.1} parent=107 // pred_region
          %p1721 = scmp.lt.s32.totalorder %s41, 1
          %s1722 = scalar_select %p1721, %s41, 1
          %p1723 = scmp.lt.s32.totalorder %s42, 0
          %s1724 = scalar_select %p1723, %s42, 0
          %s1725 = sadd.s32 %s1724, %s1722
          %s1726 = smul.addr %s1725, 8
          %s1727 = scalar_lea.vmem %s11, %s1726
        $region120: #{tpu_custom_call.1} parent=107 // pred_fallthru
          _
      $region108: #{tpu_custom_call.1} parent=5 // pred_fallthru
        _
    $region6: #{tpu_custom_call.1} parent=1 // loop_footer
      %s32 = sadd.s32 1, %s28
    $region7: #{tpu_custom_call.1} parent=1 // loop_footer_branch
      %27 = sbr.rel target = $region3
    $region8: #{tpu_custom_call.1} parent=1 // loop_exit
      _
    %1728 = vsyncpa [#allocation5], 1
    %s1729 = scalar_lea.sflag [#allocation5], 1
    %1730 = vsyncpa %s1729, 1
    %1731 = vsyncpa [#allocation8], 1
    %1732 = vsyncpa [#allocation11], 1
    %1733 = vsyncpa [#allocation14], 1
    %1734 = vsyncpa [#allocation6], 1
    %s1735 = scalar_lea.sflag [#allocation6], 1
    %1736 = vsyncpa %s1735, 1
    %1737 = vsyncpa [#allocation19], 1
    %s1738 = scalar_lea.sflag [#allocation19], 1
    %1739 = vsyncpa %s1738, 1

</llo_original>
